<compile_context>
chip_gen: v6e
topology: v6e:2x2x1
jax: 0.10.0
libtpu: 0.0.40
codegen_flags: <defaults>
</compile_context>

<pallas_src>
import jax
import jax.numpy as jnp
from jax import lax
from jax.experimental import pallas as pl
from jax.experimental.pallas import tpu as pltpu


def _make_kernel(H, W, C):
    HW = H * W

    def conv3x3(xf, w, bias, mask_ref):
        """3x3 cross-correlation, padding=1, on a flattened (C, H*W) plane.

        xf:       (C_in, HW) float32 plane (channels on sublanes, pixels on lanes)
        w:        (C_out, 9*C_in) weights; column index = (ky*3 + kx)*C_in + ci
        bias:     (C_out, 1)
        mask_ref: (9, HW) float32 ref of 0/1 boundary masks, one row per tap
        """
        acc = jnp.zeros((C, HW), jnp.float32)
        for ky in range(3):
            for kx in range(3):
                dy, dx = ky - 1, kx - 1
                s = dy * W + dx                      # flattened pixel shift
                t = ky * 3 + kx
                if s == 0:
                    shifted = xf
                else:
                    # shifted[:, p] = xf[:, p + s] (circular; wrap-around pixels
                    # are zeroed by the boundary mask -> implicit zero padding)
                    shifted = pltpu.roll(xf, shift=(-s) % HW, axis=1)
                    shifted = shifted * mask_ref[t:t + 1, :]
                for ci in range(C):
                    col = w[:, t * C + ci:t * C + ci + 1]      # (C_out, 1)
                    acc = acc + col * shifted[ci:ci + 1, :]    # rank-1 VPU FMA
        return acc + bias

    def kernel(xc_ref, xf_ref, mask_ref, w1_ref, b1_ref, w2_ref, b2_ref,
               o_ref, emb_ref_sc):
        i = pl.program_id(1)

        # temporal_attn1 on the center frame: once per batch element, cached in
        # a VMEM scratch that persists across the T grid steps of this batch.
        @pl.when(i == 0)
        def _():
            emb_ref_sc[...] = conv3x3(xc_ref[...], w1_ref[...], b1_ref[...],
                                      mask_ref)

        xf = xf_ref[...]                                          # (C, HW)
        emb_i = conv3x3(xf, w2_ref[...], b2_ref[...], mask_ref)   # temporal_attn2
        corr = jnp.sum(emb_i * emb_ref_sc[...], axis=0, keepdims=True)  # (1, HW)
        prob = jax.nn.sigmoid(corr)
        o_ref[...] = (xf * prob).astype(o_ref.dtype)              # lane-dense store

    return kernel


def ta_fusion_pallas(x, w1, b1, w2, b2, center_frame_idx):
    """x: (b, t, c, h, w) float32.  w*: (c, c, 3, 3) (PyTorch OIHW).  b*: (c,).

    Returns (b, t*c, h, w) float32, matching the PyTorch module.
    """
    B, T, C, H, W = x.shape
    HW = H * W
    cfi = int(center_frame_idx)   # must be a static Python int (baked in)

    # Only free row-major reshapes here: no transposes, no padding pass.
    x_r = x.reshape(B, T, C, HW)

    # Weights: (Cout, Cin, 3, 3) -> (Cout, 9*Cin); column = (ky*3+kx)*Cin + ci.
    w1_k = jnp.transpose(w1, (0, 2, 3, 1)).reshape(C, 9 * C)
    w2_k = jnp.transpose(w2, (0, 2, 3, 1)).reshape(C, 9 * C)
    b1_k = b1.reshape(C, 1)
    b2_k = b2.reshape(C, 1)

    # 0/1 boundary masks for the 9 conv taps (tiny constant, fetched once).
    yy, xx = jnp.meshgrid(jnp.arange(H), jnp.arange(W), indexing="ij")
    rows = []
    for ky in range(3):
        for kx in range(3):
            dy, dx = ky - 1, kx - 1
            m = ((yy + dy >= 0) & (yy + dy < H) &
                 (xx + dx >= 0) & (xx + dx < W))
            rows.append(m.reshape(HW))
    mask_arr = jnp.stack(rows).astype(jnp.float32)                # (9, HW)

    kernel = _make_kernel(H, W, C)

    out = pl.pallas_call(
        kernel,
        out_shape=jax.ShapeDtypeStruct((B, T, C, HW), jnp.float32),
        grid_spec=pltpu.PrefetchScalarGridSpec(
            num_scalar_prefetch=0,
            grid=(B, T),
            in_specs=[
                # Center frame (block index only changes with b -> fetched once
                # per batch element by the auto-pipeline).
                pl.BlockSpec((None, None, C, HW),
                             lambda b, i: (b, cfi, 0, 0)),
                # Frame i.
                pl.BlockSpec((None, None, C, HW),
                             lambda b, i: (b, i, 0, 0)),
                pl.BlockSpec((9, HW), lambda b, i: (0, 0)),
                pl.BlockSpec((C, 9 * C), lambda b, i: (0, 0)),
                pl.BlockSpec((C, 1), lambda b, i: (0, 0)),
                pl.BlockSpec((C, 9 * C), lambda b, i: (0, 0)),
                pl.BlockSpec((C, 1), lambda b, i: (0, 0)),
            ],
            out_specs=pl.BlockSpec((None, None, C, HW),
                                   lambda b, i: (b, i, 0, 0)),
            scratch_shapes=[pltpu.VMEM((C, HW), jnp.float32)],
        ),
        compiler_params=pltpu.CompilerParams(
            dimension_semantics=("parallel", "arbitrary")),
    )(x_r, x_r, mask_arr, w1_k, b1_k, w2_k, b2_k)

    # TODO(synk): for production shapes (C=64, H=W>=64) switch the conv to an
    # im2col + single MXU matmul, add an H-row grid axis (1-row halo) so the
    # per-step block fits v7x's 64 MiB VMEM, and set vmem_limit_bytes.
    return out.reshape(B, T * C, H, W)


def ta_fusion_reference(x, w1, b1, w2, b2, center_frame_idx):
    """Pure-JAX (XLA) reference mirroring the PyTorch forward."""
    B, T, C, H, W = x.shape
    dn = ("NCHW", "OIHW", "NCHW")

    def conv(inp, wt, bs):
        y = lax.conv_general_dilated(inp, wt, (1, 1), [(1, 1), (1, 1)],
                                     dimension_numbers=dn)
        return y + bs[None, :, None, None]

    emb_ref = conv(x[:, center_frame_idx], w1, b1)                   # (B,C,H,W)
    emb = conv(x.reshape(-1, C, H, W), w2, b2).reshape(B, T, C, H, W)
    corr = jnp.sum(emb * emb_ref[:, None], axis=2)                   # (B,T,H,W)
    prob = jax.nn.sigmoid(corr)[:, :, None]                          # (B,T,1,H,W)
    return (x * prob).reshape(B, T * C, H, W)


if __name__ == "__main__":
    # Small shapes consistent with the module: num_feat=4, num_frame=3, center=1
    B, T, C, H, W = 2, 3, 4, 16, 16
    CENTER = 1

    key = jax.random.PRNGKey(0)
    kx, kw1, kb1, kw2, kb2 = jax.random.split(key, 5)

    x = jax.random.normal(kx, (B, T, C, H, W), dtype=jnp.float32)
    # Deterministic synthetic Conv2d parameters (PyTorch layout: (Cout, Cin, 3, 3)).
    w1 = 0.1 * jax.random.normal(kw1, (C, C, 3, 3), dtype=jnp.float32)
    b1 = 0.1 * jax.random.normal(kb1, (C,), dtype=jnp.float32)
    w2 = 0.1 * jax.random.normal(kw2, (C, C, 3, 3), dtype=jnp.float32)
    b2 = 0.1 * jax.random.normal(kb2, (C,), dtype=jnp.float32)

    out = ta_fusion_pallas(x, w1, b1, w2, b2, CENTER)
    out = jax.block_until_ready(out)

    ref = jax.block_until_ready(ta_fusion_reference(x, w1, b1, w2, b2, CENTER))

    assert out.shape == (B, T * C, H, W), out.shape
    assert jnp.allclose(out, ref, atol=1e-4, rtol=1e-4), (
        float(jnp.max(jnp.abs(out - ref))))

    print("KERNEL_OK")
</pallas_src>

<mosaic_0001>
module attributes {stable_mosaic.version = 11 : i64} {
  func.func @kernel(%arg0: i32, %arg1: i32, %arg2: memref<1x1x4x256xf32, #tpu.memory_space<vmem>>, %arg3: memref<1x1x4x256xf32, #tpu.memory_space<vmem>>, %arg4: memref<9x256xf32, #tpu.memory_space<vmem>>, %arg5: memref<4x36xf32, #tpu.memory_space<vmem>>, %arg6: memref<4x1xf32, #tpu.memory_space<vmem>>, %arg7: memref<4x36xf32, #tpu.memory_space<vmem>>, %arg8: memref<4x1xf32, #tpu.memory_space<vmem>>, %arg9: memref<1x1x4x256xf32, #tpu.memory_space<vmem>>, %arg10: memref<4x256xf32, #tpu.memory_space<vmem>>) attributes {dimension_semantics = [#tpu.dimension_semantics<parallel>, #tpu.dimension_semantics<arbitrary>], iteration_bounds = array<i64: 2, 3>, scalar_prefetch = 0 : i64, scratch_operands = 1 : i64, tpu.core_type = #tpu.core_type<tc>, window_params = [{transform_indices = @transform_0, window_bounds = array<i64: 1, 1, 4, 256>}, {transform_indices = @transform_1, window_bounds = array<i64: 1, 1, 4, 256>}, {pipeline_mode = #tpu.pipeline_mode<synchronous>, transform_indices = @transform_2, window_bounds = array<i64: 9, 256>}, {pipeline_mode = #tpu.pipeline_mode<synchronous>, transform_indices = @transform_3, window_bounds = array<i64: 4, 36>}, {pipeline_mode = #tpu.pipeline_mode<synchronous>, transform_indices = @transform_4, window_bounds = array<i64: 4, 1>}, {pipeline_mode = #tpu.pipeline_mode<synchronous>, transform_indices = @transform_5, window_bounds = array<i64: 4, 36>}, {pipeline_mode = #tpu.pipeline_mode<synchronous>, transform_indices = @transform_6, window_bounds = array<i64: 4, 1>}, {transform_indices = @transform_7, window_bounds = array<i64: 1, 1, 4, 256>}]} {
    %c0_i32 = arith.constant 0 : i32
    %0 = arith.cmpi eq, %arg1, %c0_i32 : i32
    %1 = arith.extui %0 : i1 to i32
    %c0_i32_0 = arith.constant 0 : i32
    %2 = arith.cmpi ne, %1, %c0_i32_0 : i32
    scf.if %2 {
      %c0_25 = arith.constant 0 : index
      %c0_26 = arith.constant 0 : index
      %c0_27 = arith.constant 0 : index
      %c0_28 = arith.constant 0 : index
      %272 = vector.load %arg2[%c0_25, %c0_26, %c0_27, %c0_28] : memref<1x1x4x256xf32, #tpu.memory_space<vmem>>, vector<1x1x4x256xf32>
      %273 = vector.shape_cast %272 : vector<1x1x4x256xf32> to vector<4x256xf32>
      %c0_29 = arith.constant 0 : index
      %c0_30 = arith.constant 0 : index
      %274 = vector.load %arg5[%c0_29, %c0_30] : memref<4x36xf32, #tpu.memory_space<vmem>>, vector<4x36xf32>
      %c0_31 = arith.constant 0 : index
      %c0_32 = arith.constant 0 : index
      %275 = vector.load %arg6[%c0_31, %c0_32] : memref<4x1xf32, #tpu.memory_space<vmem>>, vector<4x1xf32>
      %cst_33 = arith.constant 0.000000e+00 : f32
      %276 = vector.broadcast %cst_33 : f32 to vector<4x256xf32>
      %c17_i32_34 = arith.constant 17 : i32
      %277 = tpu.dynamic_rotate %273 by %c17_i32_34 dim 1 : vector<4x256xf32>, i32 -> vector<4x256xf32>
      %c0_35 = arith.constant 0 : index
      %c0_36 = arith.constant 0 : index
      %278 = vector.load %arg4[%c0_35, %c0_36] : memref<9x256xf32, #tpu.memory_space<vmem>>, vector<1x256xf32>
      %279 = vector.broadcast %278 : vector<1x256xf32> to vector<4x256xf32>
      %280 = arith.mulf %277, %279 : vector<4x256xf32>
      %281 = vector.extract_strided_slice %274 {offsets = [0, 0], sizes = [4, 1], strides = [1, 1]} : vector<4x36xf32> to vector<4x1xf32>
      %282 = vector.extract_strided_slice %280 {offsets = [0, 0], sizes = [1, 256], strides = [1, 1]} : vector<4x256xf32> to vector<1x256xf32>
      %283 = vector.broadcast %281 : vector<4x1xf32> to vector<4x256xf32>
      %284 = vector.broadcast %282 : vector<1x256xf32> to vector<4x256xf32>
      %285 = arith.mulf %283, %284 : vector<4x256xf32>
      %286 = arith.addf %276, %285 : vector<4x256xf32>
      %287 = vector.extract_strided_slice %274 {offsets = [0, 1], sizes = [4, 1], strides = [1, 1]} : vector<4x36xf32> to vector<4x1xf32>
      %288 = vector.extract_strided_slice %280 {offsets = [1, 0], sizes = [1, 256], strides = [1, 1]} : vector<4x256xf32> to vector<1x256xf32>
      %289 = vector.broadcast %287 : vector<4x1xf32> to vector<4x256xf32>
      %290 = vector.broadcast %288 : vector<1x256xf32> to vector<4x256xf32>
      %291 = arith.mulf %289, %290 : vector<4x256xf32>
      %292 = arith.addf %286, %291 : vector<4x256xf32>
      %293 = vector.extract_strided_slice %274 {offsets = [0, 2], sizes = [4, 1], strides = [1, 1]} : vector<4x36xf32> to vector<4x1xf32>
      %294 = vector.extract_strided_slice %280 {offsets = [2, 0], sizes = [1, 256], strides = [1, 1]} : vector<4x256xf32> to vector<1x256xf32>
      %295 = vector.broadcast %293 : vector<4x1xf32> to vector<4x256xf32>
      %296 = vector.broadcast %294 : vector<1x256xf32> to vector<4x256xf32>
      %297 = arith.mulf %295, %296 : vector<4x256xf32>
      %298 = arith.addf %292, %297 : vector<4x256xf32>
      %299 = vector.extract_strided_slice %274 {offsets = [0, 3], sizes = [4, 1], strides = [1, 1]} : vector<4x36xf32> to vector<4x1xf32>
      %300 = vector.extract_strided_slice %280 {offsets = [3, 0], sizes = [1, 256], strides = [1, 1]} : vector<4x256xf32> to vector<1x256xf32>
      %301 = vector.broadcast %299 : vector<4x1xf32> to vector<4x256xf32>
      %302 = vector.broadcast %300 : vector<1x256xf32> to vector<4x256xf32>
      %303 = arith.mulf %301, %302 : vector<4x256xf32>
      %304 = arith.addf %298, %303 : vector<4x256xf32>
      %c16_i32_37 = arith.constant 16 : i32
      %305 = tpu.dynamic_rotate %273 by %c16_i32_37 dim 1 : vector<4x256xf32>, i32 -> vector<4x256xf32>
      %c1_38 = arith.constant 1 : index
      %c0_39 = arith.constant 0 : index
      %306 = vector.load %arg4[%c1_38, %c0_39] : memref<9x256xf32, #tpu.memory_space<vmem>>, vector<1x256xf32>
      %307 = vector.broadcast %306 : vector<1x256xf32> to vector<4x256xf32>
      %308 = arith.mulf %305, %307 : vector<4x256xf32>
      %309 = vector.extract_strided_slice %274 {offsets = [0, 4], sizes = [4, 1], strides = [1, 1]} : vector<4x36xf32> to vector<4x1xf32>
      %310 = vector.extract_strided_slice %308 {offsets = [0, 0], sizes = [1, 256], strides = [1, 1]} : vector<4x256xf32> to vector<1x256xf32>
      %311 = vector.broadcast %309 : vector<4x1xf32> to vector<4x256xf32>
      %312 = vector.broadcast %310 : vector<1x256xf32> to vector<4x256xf32>
      %313 = arith.mulf %311, %312 : vector<4x256xf32>
      %314 = arith.addf %304, %313 : vector<4x256xf32>
      %315 = vector.extract_strided_slice %274 {offsets = [0, 5], sizes = [4, 1], strides = [1, 1]} : vector<4x36xf32> to vector<4x1xf32>
      %316 = vector.extract_strided_slice %308 {offsets = [1, 0], sizes = [1, 256], strides = [1, 1]} : vector<4x256xf32> to vector<1x256xf32>
      %317 = vector.broadcast %315 : vector<4x1xf32> to vector<4x256xf32>
      %318 = vector.broadcast %316 : vector<1x256xf32> to vector<4x256xf32>
      %319 = arith.mulf %317, %318 : vector<4x256xf32>
      %320 = arith.addf %314, %319 : vector<4x256xf32>
      %321 = vector.extract_strided_slice %274 {offsets = [0, 6], sizes = [4, 1], strides = [1, 1]} : vector<4x36xf32> to vector<4x1xf32>
      %322 = vector.extract_strided_slice %308 {offsets = [2, 0], sizes = [1, 256], strides = [1, 1]} : vector<4x256xf32> to vector<1x256xf32>
      %323 = vector.broadcast %321 : vector<4x1xf32> to vector<4x256xf32>
      %324 = vector.broadcast %322 : vector<1x256xf32> to vector<4x256xf32>
      %325 = arith.mulf %323, %324 : vector<4x256xf32>
      %326 = arith.addf %320, %325 : vector<4x256xf32>
      %327 = vector.extract_strided_slice %274 {offsets = [0, 7], sizes = [4, 1], strides = [1, 1]} : vector<4x36xf32> to vector<4x1xf32>
      %328 = vector.extract_strided_slice %308 {offsets = [3, 0], sizes = [1, 256], strides = [1, 1]} : vector<4x256xf32> to vector<1x256xf32>
      %329 = vector.broadcast %327 : vector<4x1xf32> to vector<4x256xf32>
      %330 = vector.broadcast %328 : vector<1x256xf32> to vector<4x256xf32>
      %331 = arith.mulf %329, %330 : vector<4x256xf32>
      %332 = arith.addf %326, %331 : vector<4x256xf32>
      %c15_i32_40 = arith.constant 15 : i32
      %333 = tpu.dynamic_rotate %273 by %c15_i32_40 dim 1 : vector<4x256xf32>, i32 -> vector<4x256xf32>
      %c2_41 = arith.constant 2 : index
      %c0_42 = arith.constant 0 : index
      %334 = vector.load %arg4[%c2_41, %c0_42] : memref<9x256xf32, #tpu.memory_space<vmem>>, vector<1x256xf32>
      %335 = vector.broadcast %334 : vector<1x256xf32> to vector<4x256xf32>
      %336 = arith.mulf %333, %335 : vector<4x256xf32>
      %337 = vector.extract_strided_slice %274 {offsets = [0, 8], sizes = [4, 1], strides = [1, 1]} : vector<4x36xf32> to vector<4x1xf32>
      %338 = vector.extract_strided_slice %336 {offsets = [0, 0], sizes = [1, 256], strides = [1, 1]} : vector<4x256xf32> to vector<1x256xf32>
      %339 = vector.broadcast %337 : vector<4x1xf32> to vector<4x256xf32>
      %340 = vector.broadcast %338 : vector<1x256xf32> to vector<4x256xf32>
      %341 = arith.mulf %339, %340 : vector<4x256xf32>
      %342 = arith.addf %332, %341 : vector<4x256xf32>
      %343 = vector.extract_strided_slice %274 {offsets = [0, 9], sizes = [4, 1], strides = [1, 1]} : vector<4x36xf32> to vector<4x1xf32>
      %344 = vector.extract_strided_slice %336 {offsets = [1, 0], sizes = [1, 256], strides = [1, 1]} : vector<4x256xf32> to vector<1x256xf32>
      %345 = vector.broadcast %343 : vector<4x1xf32> to vector<4x256xf32>
      %346 = vector.broadcast %344 : vector<1x256xf32> to vector<4x256xf32>
      %347 = arith.mulf %345, %346 : vector<4x256xf32>
      %348 = arith.addf %342, %347 : vector<4x256xf32>
      %349 = vector.extract_strided_slice %274 {offsets = [0, 10], sizes = [4, 1], strides = [1, 1]} : vector<4x36xf32> to vector<4x1xf32>
      %350 = vector.extract_strided_slice %336 {offsets = [2, 0], sizes = [1, 256], strides = [1, 1]} : vector<4x256xf32> to vector<1x256xf32>
      %351 = vector.broadcast %349 : vector<4x1xf32> to vector<4x256xf32>
      %352 = vector.broadcast %350 : vector<1x256xf32> to vector<4x256xf32>
      %353 = arith.mulf %351, %352 : vector<4x256xf32>
      %354 = arith.addf %348, %353 : vector<4x256xf32>
      %355 = vector.extract_strided_slice %274 {offsets = [0, 11], sizes = [4, 1], strides = [1, 1]} : vector<4x36xf32> to vector<4x1xf32>
      %356 = vector.extract_strided_slice %336 {offsets = [3, 0], sizes = [1, 256], strides = [1, 1]} : vector<4x256xf32> to vector<1x256xf32>
      %357 = vector.broadcast %355 : vector<4x1xf32> to vector<4x256xf32>
      %358 = vector.broadcast %356 : vector<1x256xf32> to vector<4x256xf32>
      %359 = arith.mulf %357, %358 : vector<4x256xf32>
      %360 = arith.addf %354, %359 : vector<4x256xf32>
      %c1_i32_43 = arith.constant 1 : i32
      %361 = tpu.dynamic_rotate %273 by %c1_i32_43 dim 1 : vector<4x256xf32>, i32 -> vector<4x256xf32>
      %c3_44 = arith.constant 3 : index
      %c0_45 = arith.constant 0 : index
      %362 = vector.load %arg4[%c3_44, %c0_45] : memref<9x256xf32, #tpu.memory_space<vmem>>, vector<1x256xf32>
      %363 = vector.broadcast %362 : vector<1x256xf32> to vector<4x256xf32>
      %364 = arith.mulf %361, %363 : vector<4x256xf32>
      %365 = vector.extract_strided_slice %274 {offsets = [0, 12], sizes = [4, 1], strides = [1, 1]} : vector<4x36xf32> to vector<4x1xf32>
      %366 = vector.extract_strided_slice %364 {offsets = [0, 0], sizes = [1, 256], strides = [1, 1]} : vector<4x256xf32> to vector<1x256xf32>
      %367 = vector.broadcast %365 : vector<4x1xf32> to vector<4x256xf32>
      %368 = vector.broadcast %366 : vector<1x256xf32> to vector<4x256xf32>
      %369 = arith.mulf %367, %368 : vector<4x256xf32>
      %370 = arith.addf %360, %369 : vector<4x256xf32>
      %371 = vector.extract_strided_slice %274 {offsets = [0, 13], sizes = [4, 1], strides = [1, 1]} : vector<4x36xf32> to vector<4x1xf32>
      %372 = vector.extract_strided_slice %364 {offsets = [1, 0], sizes = [1, 256], strides = [1, 1]} : vector<4x256xf32> to vector<1x256xf32>
      %373 = vector.broadcast %371 : vector<4x1xf32> to vector<4x256xf32>
      %374 = vector.broadcast %372 : vector<1x256xf32> to vector<4x256xf32>
      %375 = arith.mulf %373, %374 : vector<4x256xf32>
      %376 = arith.addf %370, %375 : vector<4x256xf32>
      %377 = vector.extract_strided_slice %274 {offsets = [0, 14], sizes = [4, 1], strides = [1, 1]} : vector<4x36xf32> to vector<4x1xf32>
      %378 = vector.extract_strided_slice %364 {offsets = [2, 0], sizes = [1, 256], strides = [1, 1]} : vector<4x256xf32> to vector<1x256xf32>
      %379 = vector.broadcast %377 : vector<4x1xf32> to vector<4x256xf32>
      %380 = vector.broadcast %378 : vector<1x256xf32> to vector<4x256xf32>
      %381 = arith.mulf %379, %380 : vector<4x256xf32>
      %382 = arith.addf %376, %381 : vector<4x256xf32>
      %383 = vector.extract_strided_slice %274 {offsets = [0, 15], sizes = [4, 1], strides = [1, 1]} : vector<4x36xf32> to vector<4x1xf32>
      %384 = vector.extract_strided_slice %364 {offsets = [3, 0], sizes = [1, 256], strides = [1, 1]} : vector<4x256xf32> to vector<1x256xf32>
      %385 = vector.broadcast %383 : vector<4x1xf32> to vector<4x256xf32>
      %386 = vector.broadcast %384 : vector<1x256xf32> to vector<4x256xf32>
      %387 = arith.mulf %385, %386 : vector<4x256xf32>
      %388 = arith.addf %382, %387 : vector<4x256xf32>
      %389 = vector.extract_strided_slice %274 {offsets = [0, 16], sizes = [4, 1], strides = [1, 1]} : vector<4x36xf32> to vector<4x1xf32>
      %390 = vector.extract_strided_slice %273 {offsets = [0, 0], sizes = [1, 256], strides = [1, 1]} : vector<4x256xf32> to vector<1x256xf32>
      %391 = vector.broadcast %389 : vector<4x1xf32> to vector<4x256xf32>
      %392 = vector.broadcast %390 : vector<1x256xf32> to vector<4x256xf32>
      %393 = arith.mulf %391, %392 : vector<4x256xf32>
      %394 = arith.addf %388, %393 : vector<4x256xf32>
      %395 = vector.extract_strided_slice %274 {offsets = [0, 17], sizes = [4, 1], strides = [1, 1]} : vector<4x36xf32> to vector<4x1xf32>
      %396 = vector.extract_strided_slice %273 {offsets = [1, 0], sizes = [1, 256], strides = [1, 1]} : vector<4x256xf32> to vector<1x256xf32>
      %397 = vector.broadcast %395 : vector<4x1xf32> to vector<4x256xf32>
      %398 = vector.broadcast %396 : vector<1x256xf32> to vector<4x256xf32>
      %399 = arith.mulf %397, %398 : vector<4x256xf32>
      %400 = arith.addf %394, %399 : vector<4x256xf32>
      %401 = vector.extract_strided_slice %274 {offsets = [0, 18], sizes = [4, 1], strides = [1, 1]} : vector<4x36xf32> to vector<4x1xf32>
      %402 = vector.extract_strided_slice %273 {offsets = [2, 0], sizes = [1, 256], strides = [1, 1]} : vector<4x256xf32> to vector<1x256xf32>
      %403 = vector.broadcast %401 : vector<4x1xf32> to vector<4x256xf32>
      %404 = vector.broadcast %402 : vector<1x256xf32> to vector<4x256xf32>
      %405 = arith.mulf %403, %404 : vector<4x256xf32>
      %406 = arith.addf %400, %405 : vector<4x256xf32>
      %407 = vector.extract_strided_slice %274 {offsets = [0, 19], sizes = [4, 1], strides = [1, 1]} : vector<4x36xf32> to vector<4x1xf32>
      %408 = vector.extract_strided_slice %273 {offsets = [3, 0], sizes = [1, 256], strides = [1, 1]} : vector<4x256xf32> to vector<1x256xf32>
      %409 = vector.broadcast %407 : vector<4x1xf32> to vector<4x256xf32>
      %410 = vector.broadcast %408 : vector<1x256xf32> to vector<4x256xf32>
      %411 = arith.mulf %409, %410 : vector<4x256xf32>
      %412 = arith.addf %406, %411 : vector<4x256xf32>
      %c255_i32_46 = arith.constant 255 : i32
      %413 = tpu.dynamic_rotate %273 by %c255_i32_46 dim 1 : vector<4x256xf32>, i32 -> vector<4x256xf32>
      %c5_47 = arith.constant 5 : index
      %c0_48 = arith.constant 0 : index
      %414 = vector.load %arg4[%c5_47, %c0_48] : memref<9x256xf32, #tpu.memory_space<vmem>>, vector<1x256xf32>
      %415 = vector.broadcast %414 : vector<1x256xf32> to vector<4x256xf32>
      %416 = arith.mulf %413, %415 : vector<4x256xf32>
      %417 = vector.extract_strided_slice %274 {offsets = [0, 20], sizes = [4, 1], strides = [1, 1]} : vector<4x36xf32> to vector<4x1xf32>
      %418 = vector.extract_strided_slice %416 {offsets = [0, 0], sizes = [1, 256], strides = [1, 1]} : vector<4x256xf32> to vector<1x256xf32>
      %419 = vector.broadcast %417 : vector<4x1xf32> to vector<4x256xf32>
      %420 = vector.broadcast %418 : vector<1x256xf32> to vector<4x256xf32>
      %421 = arith.mulf %419, %420 : vector<4x256xf32>
      %422 = arith.addf %412, %421 : vector<4x256xf32>
      %423 = vector.extract_strided_slice %274 {offsets = [0, 21], sizes = [4, 1], strides = [1, 1]} : vector<4x36xf32> to vector<4x1xf32>
      %424 = vector.extract_strided_slice %416 {offsets = [1, 0], sizes = [1, 256], strides = [1, 1]} : vector<4x256xf32> to vector<1x256xf32>
      %425 = vector.broadcast %423 : vector<4x1xf32> to vector<4x256xf32>
      %426 = vector.broadcast %424 : vector<1x256xf32> to vector<4x256xf32>
      %427 = arith.mulf %425, %426 : vector<4x256xf32>
      %428 = arith.addf %422, %427 : vector<4x256xf32>
      %429 = vector.extract_strided_slice %274 {offsets = [0, 22], sizes = [4, 1], strides = [1, 1]} : vector<4x36xf32> to vector<4x1xf32>
      %430 = vector.extract_strided_slice %416 {offsets = [2, 0], sizes = [1, 256], strides = [1, 1]} : vector<4x256xf32> to vector<1x256xf32>
      %431 = vector.broadcast %429 : vector<4x1xf32> to vector<4x256xf32>
      %432 = vector.broadcast %430 : vector<1x256xf32> to vector<4x256xf32>
      %433 = arith.mulf %431, %432 : vector<4x256xf32>
      %434 = arith.addf %428, %433 : vector<4x256xf32>
      %435 = vector.extract_strided_slice %274 {offsets = [0, 23], sizes = [4, 1], strides = [1, 1]} : vector<4x36xf32> to vector<4x1xf32>
      %436 = vector.extract_strided_slice %416 {offsets = [3, 0], sizes = [1, 256], strides = [1, 1]} : vector<4x256xf32> to vector<1x256xf32>
      %437 = vector.broadcast %435 : vector<4x1xf32> to vector<4x256xf32>
      %438 = vector.broadcast %436 : vector<1x256xf32> to vector<4x256xf32>
      %439 = arith.mulf %437, %438 : vector<4x256xf32>
      %440 = arith.addf %434, %439 : vector<4x256xf32>
      %c241_i32_49 = arith.constant 241 : i32
      %441 = tpu.dynamic_rotate %273 by %c241_i32_49 dim 1 : vector<4x256xf32>, i32 -> vector<4x256xf32>
      %c6_50 = arith.constant 6 : index
      %c0_51 = arith.constant 0 : index
      %442 = vector.load %arg4[%c6_50, %c0_51] : memref<9x256xf32, #tpu.memory_space<vmem>>, vector<1x256xf32>
      %443 = vector.broadcast %442 : vector<1x256xf32> to vector<4x256xf32>
      %444 = arith.mulf %441, %443 : vector<4x256xf32>
      %445 = vector.extract_strided_slice %274 {offsets = [0, 24], sizes = [4, 1], strides = [1, 1]} : vector<4x36xf32> to vector<4x1xf32>
      %446 = vector.extract_strided_slice %444 {offsets = [0, 0], sizes = [1, 256], strides = [1, 1]} : vector<4x256xf32> to vector<1x256xf32>
      %447 = vector.broadcast %445 : vector<4x1xf32> to vector<4x256xf32>
      %448 = vector.broadcast %446 : vector<1x256xf32> to vector<4x256xf32>
      %449 = arith.mulf %447, %448 : vector<4x256xf32>
      %450 = arith.addf %440, %449 : vector<4x256xf32>
      %451 = vector.extract_strided_slice %274 {offsets = [0, 25], sizes = [4, 1], strides = [1, 1]} : vector<4x36xf32> to vector<4x1xf32>
      %452 = vector.extract_strided_slice %444 {offsets = [1, 0], sizes = [1, 256], strides = [1, 1]} : vector<4x256xf32> to vector<1x256xf32>
      %453 = vector.broadcast %451 : vector<4x1xf32> to vector<4x256xf32>
      %454 = vector.broadcast %452 : vector<1x256xf32> to vector<4x256xf32>
      %455 = arith.mulf %453, %454 : vector<4x256xf32>
      %456 = arith.addf %450, %455 : vector<4x256xf32>
      %457 = vector.extract_strided_slice %274 {offsets = [0, 26], sizes = [4, 1], strides = [1, 1]} : vector<4x36xf32> to vector<4x1xf32>
      %458 = vector.extract_strided_slice %444 {offsets = [2, 0], sizes = [1, 256], strides = [1, 1]} : vector<4x256xf32> to vector<1x256xf32>
      %459 = vector.broadcast %457 : vector<4x1xf32> to vector<4x256xf32>
      %460 = vector.broadcast %458 : vector<1x256xf32> to vector<4x256xf32>
      %461 = arith.mulf %459, %460 : vector<4x256xf32>
      %462 = arith.addf %456, %461 : vector<4x256xf32>
      %463 = vector.extract_strided_slice %274 {offsets = [0, 27], sizes = [4, 1], strides = [1, 1]} : vector<4x36xf32> to vector<4x1xf32>
      %464 = vector.extract_strided_slice %444 {offsets = [3, 0], sizes = [1, 256], strides = [1, 1]} : vector<4x256xf32> to vector<1x256xf32>
      %465 = vector.broadcast %463 : vector<4x1xf32> to vector<4x256xf32>
      %466 = vector.broadcast %464 : vector<1x256xf32> to vector<4x256xf32>
      %467 = arith.mulf %465, %466 : vector<4x256xf32>
      %468 = arith.addf %462, %467 : vector<4x256xf32>
      %c240_i32_52 = arith.constant 240 : i32
      %469 = tpu.dynamic_rotate %273 by %c240_i32_52 dim 1 : vector<4x256xf32>, i32 -> vector<4x256xf32>
      %c7_53 = arith.constant 7 : index
      %c0_54 = arith.constant 0 : index
      %470 = vector.load %arg4[%c7_53, %c0_54] : memref<9x256xf32, #tpu.memory_space<vmem>>, vector<1x256xf32>
      %471 = vector.broadcast %470 : vector<1x256xf32> to vector<4x256xf32>
      %472 = arith.mulf %469, %471 : vector<4x256xf32>
      %473 = vector.extract_strided_slice %274 {offsets = [0, 28], sizes = [4, 1], strides = [1, 1]} : vector<4x36xf32> to vector<4x1xf32>
      %474 = vector.extract_strided_slice %472 {offsets = [0, 0], sizes = [1, 256], strides = [1, 1]} : vector<4x256xf32> to vector<1x256xf32>
      %475 = vector.broadcast %473 : vector<4x1xf32> to vector<4x256xf32>
      %476 = vector.broadcast %474 : vector<1x256xf32> to vector<4x256xf32>
      %477 = arith.mulf %475, %476 : vector<4x256xf32>
      %478 = arith.addf %468, %477 : vector<4x256xf32>
      %479 = vector.extract_strided_slice %274 {offsets = [0, 29], sizes = [4, 1], strides = [1, 1]} : vector<4x36xf32> to vector<4x1xf32>
      %480 = vector.extract_strided_slice %472 {offsets = [1, 0], sizes = [1, 256], strides = [1, 1]} : vector<4x256xf32> to vector<1x256xf32>
      %481 = vector.broadcast %479 : vector<4x1xf32> to vector<4x256xf32>
      %482 = vector.broadcast %480 : vector<1x256xf32> to vector<4x256xf32>
      %483 = arith.mulf %481, %482 : vector<4x256xf32>
      %484 = arith.addf %478, %483 : vector<4x256xf32>
      %485 = vector.extract_strided_slice %274 {offsets = [0, 30], sizes = [4, 1], strides = [1, 1]} : vector<4x36xf32> to vector<4x1xf32>
      %486 = vector.extract_strided_slice %472 {offsets = [2, 0], sizes = [1, 256], strides = [1, 1]} : vector<4x256xf32> to vector<1x256xf32>
      %487 = vector.broadcast %485 : vector<4x1xf32> to vector<4x256xf32>
      %488 = vector.broadcast %486 : vector<1x256xf32> to vector<4x256xf32>
      %489 = arith.mulf %487, %488 : vector<4x256xf32>
      %490 = arith.addf %484, %489 : vector<4x256xf32>
      %491 = vector.extract_strided_slice %274 {offsets = [0, 31], sizes = [4, 1], strides = [1, 1]} : vector<4x36xf32> to vector<4x1xf32>
      %492 = vector.extract_strided_slice %472 {offsets = [3, 0], sizes = [1, 256], strides = [1, 1]} : vector<4x256xf32> to vector<1x256xf32>
      %493 = vector.broadcast %491 : vector<4x1xf32> to vector<4x256xf32>
      %494 = vector.broadcast %492 : vector<1x256xf32> to vector<4x256xf32>
      %495 = arith.mulf %493, %494 : vector<4x256xf32>
      %496 = arith.addf %490, %495 : vector<4x256xf32>
      %c239_i32_55 = arith.constant 239 : i32
      %497 = tpu.dynamic_rotate %273 by %c239_i32_55 dim 1 : vector<4x256xf32>, i32 -> vector<4x256xf32>
      %c8_56 = arith.constant 8 : index
      %c0_57 = arith.constant 0 : index
      %498 = vector.load %arg4[%c8_56, %c0_57] : memref<9x256xf32, #tpu.memory_space<vmem>>, vector<1x256xf32>
      %499 = vector.broadcast %498 : vector<1x256xf32> to vector<4x256xf32>
      %500 = arith.mulf %497, %499 : vector<4x256xf32>
      %501 = vector.extract_strided_slice %274 {offsets = [0, 32], sizes = [4, 1], strides = [1, 1]} : vector<4x36xf32> to vector<4x1xf32>
      %502 = vector.extract_strided_slice %500 {offsets = [0, 0], sizes = [1, 256], strides = [1, 1]} : vector<4x256xf32> to vector<1x256xf32>
      %503 = vector.broadcast %501 : vector<4x1xf32> to vector<4x256xf32>
      %504 = vector.broadcast %502 : vector<1x256xf32> to vector<4x256xf32>
      %505 = arith.mulf %503, %504 : vector<4x256xf32>
      %506 = arith.addf %496, %505 : vector<4x256xf32>
      %507 = vector.extract_strided_slice %274 {offsets = [0, 33], sizes = [4, 1], strides = [1, 1]} : vector<4x36xf32> to vector<4x1xf32>
      %508 = vector.extract_strided_slice %500 {offsets = [1, 0], sizes = [1, 256], strides = [1, 1]} : vector<4x256xf32> to vector<1x256xf32>
      %509 = vector.broadcast %507 : vector<4x1xf32> to vector<4x256xf32>
      %510 = vector.broadcast %508 : vector<1x256xf32> to vector<4x256xf32>
      %511 = arith.mulf %509, %510 : vector<4x256xf32>
      %512 = arith.addf %506, %511 : vector<4x256xf32>
      %513 = vector.extract_strided_slice %274 {offsets = [0, 34], sizes = [4, 1], strides = [1, 1]} : vector<4x36xf32> to vector<4x1xf32>
      %514 = vector.extract_strided_slice %500 {offsets = [2, 0], sizes = [1, 256], strides = [1, 1]} : vector<4x256xf32> to vector<1x256xf32>
      %515 = vector.broadcast %513 : vector<4x1xf32> to vector<4x256xf32>
      %516 = vector.broadcast %514 : vector<1x256xf32> to vector<4x256xf32>
      %517 = arith.mulf %515, %516 : vector<4x256xf32>
      %518 = arith.addf %512, %517 : vector<4x256xf32>
      %519 = vector.extract_strided_slice %274 {offsets = [0, 35], sizes = [4, 1], strides = [1, 1]} : vector<4x36xf32> to vector<4x1xf32>
      %520 = vector.extract_strided_slice %500 {offsets = [3, 0], sizes = [1, 256], strides = [1, 1]} : vector<4x256xf32> to vector<1x256xf32>
      %521 = vector.broadcast %519 : vector<4x1xf32> to vector<4x256xf32>
      %522 = vector.broadcast %520 : vector<1x256xf32> to vector<4x256xf32>
      %523 = arith.mulf %521, %522 : vector<4x256xf32>
      %524 = arith.addf %518, %523 : vector<4x256xf32>
      %525 = vector.broadcast %275 : vector<4x1xf32> to vector<4x256xf32>
      %526 = arith.addf %524, %525 : vector<4x256xf32>
      %c0_58 = arith.constant 0 : index
      %c0_59 = arith.constant 0 : index
      %527 = vector.load %arg10[%c0_58, %c0_59] : memref<4x256xf32, #tpu.memory_space<vmem>>, vector<4x256xf32>
      tpu.vector_store %arg10[%c0_58, %c0_59], %526 {strides = array<i32>} : memref<4x256xf32, #tpu.memory_space<vmem>>, vector<4x256xf32>,
    } else {
    }
    %c0 = arith.constant 0 : index
    %c0_1 = arith.constant 0 : index
    %c0_2 = arith.constant 0 : index
    %c0_3 = arith.constant 0 : index
    %3 = vector.load %arg3[%c0, %c0_1, %c0_2, %c0_3] : memref<1x1x4x256xf32, #tpu.memory_space<vmem>>, vector<1x1x4x256xf32>
    %4 = vector.shape_cast %3 : vector<1x1x4x256xf32> to vector<4x256xf32>
    %c0_4 = arith.constant 0 : index
    %c0_5 = arith.constant 0 : index
    %5 = vector.load %arg7[%c0_4, %c0_5] : memref<4x36xf32, #tpu.memory_space<vmem>>, vector<4x36xf32>
    %c0_6 = arith.constant 0 : index
    %c0_7 = arith.constant 0 : index
    %6 = vector.load %arg8[%c0_6, %c0_7] : memref<4x1xf32, #tpu.memory_space<vmem>>, vector<4x1xf32>
    %cst = arith.constant 0.000000e+00 : f32
    %7 = vector.broadcast %cst : f32 to vector<4x256xf32>
    %c17_i32 = arith.constant 17 : i32
    %8 = tpu.dynamic_rotate %4 by %c17_i32 dim 1 : vector<4x256xf32>, i32 -> vector<4x256xf32>
    %c0_8 = arith.constant 0 : index
    %c0_9 = arith.constant 0 : index
    %9 = vector.load %arg4[%c0_8, %c0_9] : memref<9x256xf32, #tpu.memory_space<vmem>>, vector<1x256xf32>
    %10 = vector.broadcast %9 : vector<1x256xf32> to vector<4x256xf32>
    %11 = arith.mulf %8, %10 : vector<4x256xf32>
    %12 = vector.extract_strided_slice %5 {offsets = [0, 0], sizes = [4, 1], strides = [1, 1]} : vector<4x36xf32> to vector<4x1xf32>
    %13 = vector.extract_strided_slice %11 {offsets = [0, 0], sizes = [1, 256], strides = [1, 1]} : vector<4x256xf32> to vector<1x256xf32>
    %14 = vector.broadcast %12 : vector<4x1xf32> to vector<4x256xf32>
    %15 = vector.broadcast %13 : vector<1x256xf32> to vector<4x256xf32>
    %16 = arith.mulf %14, %15 : vector<4x256xf32>
    %17 = arith.addf %7, %16 : vector<4x256xf32>
    %18 = vector.extract_strided_slice %5 {offsets = [0, 1], sizes = [4, 1], strides = [1, 1]} : vector<4x36xf32> to vector<4x1xf32>
    %19 = vector.extract_strided_slice %11 {offsets = [1, 0], sizes = [1, 256], strides = [1, 1]} : vector<4x256xf32> to vector<1x256xf32>
    %20 = vector.broadcast %18 : vector<4x1xf32> to vector<4x256xf32>
    %21 = vector.broadcast %19 : vector<1x256xf32> to vector<4x256xf32>
    %22 = arith.mulf %20, %21 : vector<4x256xf32>
    %23 = arith.addf %17, %22 : vector<4x256xf32>
    %24 = vector.extract_strided_slice %5 {offsets = [0, 2], sizes = [4, 1], strides = [1, 1]} : vector<4x36xf32> to vector<4x1xf32>
    %25 = vector.extract_strided_slice %11 {offsets = [2, 0], sizes = [1, 256], strides = [1, 1]} : vector<4x256xf32> to vector<1x256xf32>
    %26 = vector.broadcast %24 : vector<4x1xf32> to vector<4x256xf32>
    %27 = vector.broadcast %25 : vector<1x256xf32> to vector<4x256xf32>
    %28 = arith.mulf %26, %27 : vector<4x256xf32>
    %29 = arith.addf %23, %28 : vector<4x256xf32>
    %30 = vector.extract_strided_slice %5 {offsets = [0, 3], sizes = [4, 1], strides = [1, 1]} : vector<4x36xf32> to vector<4x1xf32>
    %31 = vector.extract_strided_slice %11 {offsets = [3, 0], sizes = [1, 256], strides = [1, 1]} : vector<4x256xf32> to vector<1x256xf32>
    %32 = vector.broadcast %30 : vector<4x1xf32> to vector<4x256xf32>
    %33 = vector.broadcast %31 : vector<1x256xf32> to vector<4x256xf32>
    %34 = arith.mulf %32, %33 : vector<4x256xf32>
    %35 = arith.addf %29, %34 : vector<4x256xf32>
    %c16_i32 = arith.constant 16 : i32
    %36 = tpu.dynamic_rotate %4 by %c16_i32 dim 1 : vector<4x256xf32>, i32 -> vector<4x256xf32>
    %c1 = arith.constant 1 : index
    %c0_10 = arith.constant 0 : index
    %37 = vector.load %arg4[%c1, %c0_10] : memref<9x256xf32, #tpu.memory_space<vmem>>, vector<1x256xf32>
    %38 = vector.broadcast %37 : vector<1x256xf32> to vector<4x256xf32>
    %39 = arith.mulf %36, %38 : vector<4x256xf32>
    %40 = vector.extract_strided_slice %5 {offsets = [0, 4], sizes = [4, 1], strides = [1, 1]} : vector<4x36xf32> to vector<4x1xf32>
    %41 = vector.extract_strided_slice %39 {offsets = [0, 0], sizes = [1, 256], strides = [1, 1]} : vector<4x256xf32> to vector<1x256xf32>
    %42 = vector.broadcast %40 : vector<4x1xf32> to vector<4x256xf32>
    %43 = vector.broadcast %41 : vector<1x256xf32> to vector<4x256xf32>
    %44 = arith.mulf %42, %43 : vector<4x256xf32>
    %45 = arith.addf %35, %44 : vector<4x256xf32>
    %46 = vector.extract_strided_slice %5 {offsets = [0, 5], sizes = [4, 1], strides = [1, 1]} : vector<4x36xf32> to vector<4x1xf32>
    %47 = vector.extract_strided_slice %39 {offsets = [1, 0], sizes = [1, 256], strides = [1, 1]} : vector<4x256xf32> to vector<1x256xf32>
    %48 = vector.broadcast %46 : vector<4x1xf32> to vector<4x256xf32>
    %49 = vector.broadcast %47 : vector<1x256xf32> to vector<4x256xf32>
    %50 = arith.mulf %48, %49 : vector<4x256xf32>
    %51 = arith.addf %45, %50 : vector<4x256xf32>
    %52 = vector.extract_strided_slice %5 {offsets = [0, 6], sizes = [4, 1], strides = [1, 1]} : vector<4x36xf32> to vector<4x1xf32>
    %53 = vector.extract_strided_slice %39 {offsets = [2, 0], sizes = [1, 256], strides = [1, 1]} : vector<4x256xf32> to vector<1x256xf32>
    %54 = vector.broadcast %52 : vector<4x1xf32> to vector<4x256xf32>
    %55 = vector.broadcast %53 : vector<1x256xf32> to vector<4x256xf32>
    %56 = arith.mulf %54, %55 : vector<4x256xf32>
    %57 = arith.addf %51, %56 : vector<4x256xf32>
    %58 = vector.extract_strided_slice %5 {offsets = [0, 7], sizes = [4, 1], strides = [1, 1]} : vector<4x36xf32> to vector<4x1xf32>
    %59 = vector.extract_strided_slice %39 {offsets = [3, 0], sizes = [1, 256], strides = [1, 1]} : vector<4x256xf32> to vector<1x256xf32>
    %60 = vector.broadcast %58 : vector<4x1xf32> to vector<4x256xf32>
    %61 = vector.broadcast %59 : vector<1x256xf32> to vector<4x256xf32>
    %62 = arith.mulf %60, %61 : vector<4x256xf32>
    %63 = arith.addf %57, %62 : vector<4x256xf32>
    %c15_i32 = arith.constant 15 : i32
    %64 = tpu.dynamic_rotate %4 by %c15_i32 dim 1 : vector<4x256xf32>, i32 -> vector<4x256xf32>
    %c2 = arith.constant 2 : index
    %c0_11 = arith.constant 0 : index
    %65 = vector.load %arg4[%c2, %c0_11] : memref<9x256xf32, #tpu.memory_space<vmem>>, vector<1x256xf32>
    %66 = vector.broadcast %65 : vector<1x256xf32> to vector<4x256xf32>
    %67 = arith.mulf %64, %66 : vector<4x256xf32>
    %68 = vector.extract_strided_slice %5 {offsets = [0, 8], sizes = [4, 1], strides = [1, 1]} : vector<4x36xf32> to vector<4x1xf32>
    %69 = vector.extract_strided_slice %67 {offsets = [0, 0], sizes = [1, 256], strides = [1, 1]} : vector<4x256xf32> to vector<1x256xf32>
    %70 = vector.broadcast %68 : vector<4x1xf32> to vector<4x256xf32>
    %71 = vector.broadcast %69 : vector<1x256xf32> to vector<4x256xf32>
    %72 = arith.mulf %70, %71 : vector<4x256xf32>
    %73 = arith.addf %63, %72 : vector<4x256xf32>
    %74 = vector.extract_strided_slice %5 {offsets = [0, 9], sizes = [4, 1], strides = [1, 1]} : vector<4x36xf32> to vector<4x1xf32>
    %75 = vector.extract_strided_slice %67 {offsets = [1, 0], sizes = [1, 256], strides = [1, 1]} : vector<4x256xf32> to vector<1x256xf32>
    %76 = vector.broadcast %74 : vector<4x1xf32> to vector<4x256xf32>
    %77 = vector.broadcast %75 : vector<1x256xf32> to vector<4x256xf32>
    %78 = arith.mulf %76, %77 : vector<4x256xf32>
    %79 = arith.addf %73, %78 : vector<4x256xf32>
    %80 = vector.extract_strided_slice %5 {offsets = [0, 10], sizes = [4, 1], strides = [1, 1]} : vector<4x36xf32> to vector<4x1xf32>
    %81 = vector.extract_strided_slice %67 {offsets = [2, 0], sizes = [1, 256], strides = [1, 1]} : vector<4x256xf32> to vector<1x256xf32>
    %82 = vector.broadcast %80 : vector<4x1xf32> to vector<4x256xf32>
    %83 = vector.broadcast %81 : vector<1x256xf32> to vector<4x256xf32>
    %84 = arith.mulf %82, %83 : vector<4x256xf32>
    %85 = arith.addf %79, %84 : vector<4x256xf32>
    %86 = vector.extract_strided_slice %5 {offsets = [0, 11], sizes = [4, 1], strides = [1, 1]} : vector<4x36xf32> to vector<4x1xf32>
    %87 = vector.extract_strided_slice %67 {offsets = [3, 0], sizes = [1, 256], strides = [1, 1]} : vector<4x256xf32> to vector<1x256xf32>
    %88 = vector.broadcast %86 : vector<4x1xf32> to vector<4x256xf32>
    %89 = vector.broadcast %87 : vector<1x256xf32> to vector<4x256xf32>
    %90 = arith.mulf %88, %89 : vector<4x256xf32>
    %91 = arith.addf %85, %90 : vector<4x256xf32>
    %c1_i32 = arith.constant 1 : i32
    %92 = tpu.dynamic_rotate %4 by %c1_i32 dim 1 : vector<4x256xf32>, i32 -> vector<4x256xf32>
    %c3 = arith.constant 3 : index
    %c0_12 = arith.constant 0 : index
    %93 = vector.load %arg4[%c3, %c0_12] : memref<9x256xf32, #tpu.memory_space<vmem>>, vector<1x256xf32>
    %94 = vector.broadcast %93 : vector<1x256xf32> to vector<4x256xf32>
    %95 = arith.mulf %92, %94 : vector<4x256xf32>
    %96 = vector.extract_strided_slice %5 {offsets = [0, 12], sizes = [4, 1], strides = [1, 1]} : vector<4x36xf32> to vector<4x1xf32>
    %97 = vector.extract_strided_slice %95 {offsets = [0, 0], sizes = [1, 256], strides = [1, 1]} : vector<4x256xf32> to vector<1x256xf32>
    %98 = vector.broadcast %96 : vector<4x1xf32> to vector<4x256xf32>
    %99 = vector.broadcast %97 : vector<1x256xf32> to vector<4x256xf32>
    %100 = arith.mulf %98, %99 : vector<4x256xf32>
    %101 = arith.addf %91, %100 : vector<4x256xf32>
    %102 = vector.extract_strided_slice %5 {offsets = [0, 13], sizes = [4, 1], strides = [1, 1]} : vector<4x36xf32> to vector<4x1xf32>
    %103 = vector.extract_strided_slice %95 {offsets = [1, 0], sizes = [1, 256], strides = [1, 1]} : vector<4x256xf32> to vector<1x256xf32>
    %104 = vector.broadcast %102 : vector<4x1xf32> to vector<4x256xf32>
    %105 = vector.broadcast %103 : vector<1x256xf32> to vector<4x256xf32>
    %106 = arith.mulf %104, %105 : vector<4x256xf32>
    %107 = arith.addf %101, %106 : vector<4x256xf32>
    %108 = vector.extract_strided_slice %5 {offsets = [0, 14], sizes = [4, 1], strides = [1, 1]} : vector<4x36xf32> to vector<4x1xf32>
    %109 = vector.extract_strided_slice %95 {offsets = [2, 0], sizes = [1, 256], strides = [1, 1]} : vector<4x256xf32> to vector<1x256xf32>
    %110 = vector.broadcast %108 : vector<4x1xf32> to vector<4x256xf32>
    %111 = vector.broadcast %109 : vector<1x256xf32> to vector<4x256xf32>
    %112 = arith.mulf %110, %111 : vector<4x256xf32>
    %113 = arith.addf %107, %112 : vector<4x256xf32>
    %114 = vector.extract_strided_slice %5 {offsets = [0, 15], sizes = [4, 1], strides = [1, 1]} : vector<4x36xf32> to vector<4x1xf32>
    %115 = vector.extract_strided_slice %95 {offsets = [3, 0], sizes = [1, 256], strides = [1, 1]} : vector<4x256xf32> to vector<1x256xf32>
    %116 = vector.broadcast %114 : vector<4x1xf32> to vector<4x256xf32>
    %117 = vector.broadcast %115 : vector<1x256xf32> to vector<4x256xf32>
    %118 = arith.mulf %116, %117 : vector<4x256xf32>
    %119 = arith.addf %113, %118 : vector<4x256xf32>
    %120 = vector.extract_strided_slice %5 {offsets = [0, 16], sizes = [4, 1], strides = [1, 1]} : vector<4x36xf32> to vector<4x1xf32>
    %121 = vector.extract_strided_slice %4 {offsets = [0, 0], sizes = [1, 256], strides = [1, 1]} : vector<4x256xf32> to vector<1x256xf32>
    %122 = vector.broadcast %120 : vector<4x1xf32> to vector<4x256xf32>
    %123 = vector.broadcast %121 : vector<1x256xf32> to vector<4x256xf32>
    %124 = arith.mulf %122, %123 : vector<4x256xf32>
    %125 = arith.addf %119, %124 : vector<4x256xf32>
    %126 = vector.extract_strided_slice %5 {offsets = [0, 17], sizes = [4, 1], strides = [1, 1]} : vector<4x36xf32> to vector<4x1xf32>
    %127 = vector.extract_strided_slice %4 {offsets = [1, 0], sizes = [1, 256], strides = [1, 1]} : vector<4x256xf32> to vector<1x256xf32>
    %128 = vector.broadcast %126 : vector<4x1xf32> to vector<4x256xf32>
    %129 = vector.broadcast %127 : vector<1x256xf32> to vector<4x256xf32>
    %130 = arith.mulf %128, %129 : vector<4x256xf32>
    %131 = arith.addf %125, %130 : vector<4x256xf32>
    %132 = vector.extract_strided_slice %5 {offsets = [0, 18], sizes = [4, 1], strides = [1, 1]} : vector<4x36xf32> to vector<4x1xf32>
    %133 = vector.extract_strided_slice %4 {offsets = [2, 0], sizes = [1, 256], strides = [1, 1]} : vector<4x256xf32> to vector<1x256xf32>
    %134 = vector.broadcast %132 : vector<4x1xf32> to vector<4x256xf32>
    %135 = vector.broadcast %133 : vector<1x256xf32> to vector<4x256xf32>
    %136 = arith.mulf %134, %135 : vector<4x256xf32>
    %137 = arith.addf %131, %136 : vector<4x256xf32>
    %138 = vector.extract_strided_slice %5 {offsets = [0, 19], sizes = [4, 1], strides = [1, 1]} : vector<4x36xf32> to vector<4x1xf32>
    %139 = vector.extract_strided_slice %4 {offsets = [3, 0], sizes = [1, 256], strides = [1, 1]} : vector<4x256xf32> to vector<1x256xf32>
    %140 = vector.broadcast %138 : vector<4x1xf32> to vector<4x256xf32>
    %141 = vector.broadcast %139 : vector<1x256xf32> to vector<4x256xf32>
    %142 = arith.mulf %140, %141 : vector<4x256xf32>
    %143 = arith.addf %137, %142 : vector<4x256xf32>
    %c255_i32 = arith.constant 255 : i32
    %144 = tpu.dynamic_rotate %4 by %c255_i32 dim 1 : vector<4x256xf32>, i32 -> vector<4x256xf32>
    %c5 = arith.constant 5 : index
    %c0_13 = arith.constant 0 : index
    %145 = vector.load %arg4[%c5, %c0_13] : memref<9x256xf32, #tpu.memory_space<vmem>>, vector<1x256xf32>
    %146 = vector.broadcast %145 : vector<1x256xf32> to vector<4x256xf32>
    %147 = arith.mulf %144, %146 : vector<4x256xf32>
    %148 = vector.extract_strided_slice %5 {offsets = [0, 20], sizes = [4, 1], strides = [1, 1]} : vector<4x36xf32> to vector<4x1xf32>
    %149 = vector.extract_strided_slice %147 {offsets = [0, 0], sizes = [1, 256], strides = [1, 1]} : vector<4x256xf32> to vector<1x256xf32>
    %150 = vector.broadcast %148 : vector<4x1xf32> to vector<4x256xf32>
    %151 = vector.broadcast %149 : vector<1x256xf32> to vector<4x256xf32>
    %152 = arith.mulf %150, %151 : vector<4x256xf32>
    %153 = arith.addf %143, %152 : vector<4x256xf32>
    %154 = vector.extract_strided_slice %5 {offsets = [0, 21], sizes = [4, 1], strides = [1, 1]} : vector<4x36xf32> to vector<4x1xf32>
    %155 = vector.extract_strided_slice %147 {offsets = [1, 0], sizes = [1, 256], strides = [1, 1]} : vector<4x256xf32> to vector<1x256xf32>
    %156 = vector.broadcast %154 : vector<4x1xf32> to vector<4x256xf32>
    %157 = vector.broadcast %155 : vector<1x256xf32> to vector<4x256xf32>
    %158 = arith.mulf %156, %157 : vector<4x256xf32>
    %159 = arith.addf %153, %158 : vector<4x256xf32>
    %160 = vector.extract_strided_slice %5 {offsets = [0, 22], sizes = [4, 1], strides = [1, 1]} : vector<4x36xf32> to vector<4x1xf32>
    %161 = vector.extract_strided_slice %147 {offsets = [2, 0], sizes = [1, 256], strides = [1, 1]} : vector<4x256xf32> to vector<1x256xf32>
    %162 = vector.broadcast %160 : vector<4x1xf32> to vector<4x256xf32>
    %163 = vector.broadcast %161 : vector<1x256xf32> to vector<4x256xf32>
    %164 = arith.mulf %162, %163 : vector<4x256xf32>
    %165 = arith.addf %159, %164 : vector<4x256xf32>
    %166 = vector.extract_strided_slice %5 {offsets = [0, 23], sizes = [4, 1], strides = [1, 1]} : vector<4x36xf32> to vector<4x1xf32>
    %167 = vector.extract_strided_slice %147 {offsets = [3, 0], sizes = [1, 256], strides = [1, 1]} : vector<4x256xf32> to vector<1x256xf32>
    %168 = vector.broadcast %166 : vector<4x1xf32> to vector<4x256xf32>
    %169 = vector.broadcast %167 : vector<1x256xf32> to vector<4x256xf32>
    %170 = arith.mulf %168, %169 : vector<4x256xf32>
    %171 = arith.addf %165, %170 : vector<4x256xf32>
    %c241_i32 = arith.constant 241 : i32
    %172 = tpu.dynamic_rotate %4 by %c241_i32 dim 1 : vector<4x256xf32>, i32 -> vector<4x256xf32>
    %c6 = arith.constant 6 : index
    %c0_14 = arith.constant 0 : index
    %173 = vector.load %arg4[%c6, %c0_14] : memref<9x256xf32, #tpu.memory_space<vmem>>, vector<1x256xf32>
    %174 = vector.broadcast %173 : vector<1x256xf32> to vector<4x256xf32>
    %175 = arith.mulf %172, %174 : vector<4x256xf32>
    %176 = vector.extract_strided_slice %5 {offsets = [0, 24], sizes = [4, 1], strides = [1, 1]} : vector<4x36xf32> to vector<4x1xf32>
    %177 = vector.extract_strided_slice %175 {offsets = [0, 0], sizes = [1, 256], strides = [1, 1]} : vector<4x256xf32> to vector<1x256xf32>
    %178 = vector.broadcast %176 : vector<4x1xf32> to vector<4x256xf32>
    %179 = vector.broadcast %177 : vector<1x256xf32> to vector<4x256xf32>
    %180 = arith.mulf %178, %179 : vector<4x256xf32>
    %181 = arith.addf %171, %180 : vector<4x256xf32>
    %182 = vector.extract_strided_slice %5 {offsets = [0, 25], sizes = [4, 1], strides = [1, 1]} : vector<4x36xf32> to vector<4x1xf32>
    %183 = vector.extract_strided_slice %175 {offsets = [1, 0], sizes = [1, 256], strides = [1, 1]} : vector<4x256xf32> to vector<1x256xf32>
    %184 = vector.broadcast %182 : vector<4x1xf32> to vector<4x256xf32>
    %185 = vector.broadcast %183 : vector<1x256xf32> to vector<4x256xf32>
    %186 = arith.mulf %184, %185 : vector<4x256xf32>
    %187 = arith.addf %181, %186 : vector<4x256xf32>
    %188 = vector.extract_strided_slice %5 {offsets = [0, 26], sizes = [4, 1], strides = [1, 1]} : vector<4x36xf32> to vector<4x1xf32>
    %189 = vector.extract_strided_slice %175 {offsets = [2, 0], sizes = [1, 256], strides = [1, 1]} : vector<4x256xf32> to vector<1x256xf32>
    %190 = vector.broadcast %188 : vector<4x1xf32> to vector<4x256xf32>
    %191 = vector.broadcast %189 : vector<1x256xf32> to vector<4x256xf32>
    %192 = arith.mulf %190, %191 : vector<4x256xf32>
    %193 = arith.addf %187, %192 : vector<4x256xf32>
    %194 = vector.extract_strided_slice %5 {offsets = [0, 27], sizes = [4, 1], strides = [1, 1]} : vector<4x36xf32> to vector<4x1xf32>
    %195 = vector.extract_strided_slice %175 {offsets = [3, 0], sizes = [1, 256], strides = [1, 1]} : vector<4x256xf32> to vector<1x256xf32>
    %196 = vector.broadcast %194 : vector<4x1xf32> to vector<4x256xf32>
    %197 = vector.broadcast %195 : vector<1x256xf32> to vector<4x256xf32>
    %198 = arith.mulf %196, %197 : vector<4x256xf32>
    %199 = arith.addf %193, %198 : vector<4x256xf32>
    %c240_i32 = arith.constant 240 : i32
    %200 = tpu.dynamic_rotate %4 by %c240_i32 dim 1 : vector<4x256xf32>, i32 -> vector<4x256xf32>
    %c7 = arith.constant 7 : index
    %c0_15 = arith.constant 0 : index
    %201 = vector.load %arg4[%c7, %c0_15] : memref<9x256xf32, #tpu.memory_space<vmem>>, vector<1x256xf32>
    %202 = vector.broadcast %201 : vector<1x256xf32> to vector<4x256xf32>
    %203 = arith.mulf %200, %202 : vector<4x256xf32>
    %204 = vector.extract_strided_slice %5 {offsets = [0, 28], sizes = [4, 1], strides = [1, 1]} : vector<4x36xf32> to vector<4x1xf32>
    %205 = vector.extract_strided_slice %203 {offsets = [0, 0], sizes = [1, 256], strides = [1, 1]} : vector<4x256xf32> to vector<1x256xf32>
    %206 = vector.broadcast %204 : vector<4x1xf32> to vector<4x256xf32>
    %207 = vector.broadcast %205 : vector<1x256xf32> to vector<4x256xf32>
    %208 = arith.mulf %206, %207 : vector<4x256xf32>
    %209 = arith.addf %199, %208 : vector<4x256xf32>
    %210 = vector.extract_strided_slice %5 {offsets = [0, 29], sizes = [4, 1], strides = [1, 1]} : vector<4x36xf32> to vector<4x1xf32>
    %211 = vector.extract_strided_slice %203 {offsets = [1, 0], sizes = [1, 256], strides = [1, 1]} : vector<4x256xf32> to vector<1x256xf32>
    %212 = vector.broadcast %210 : vector<4x1xf32> to vector<4x256xf32>
    %213 = vector.broadcast %211 : vector<1x256xf32> to vector<4x256xf32>
    %214 = arith.mulf %212, %213 : vector<4x256xf32>
    %215 = arith.addf %209, %214 : vector<4x256xf32>
    %216 = vector.extract_strided_slice %5 {offsets = [0, 30], sizes = [4, 1], strides = [1, 1]} : vector<4x36xf32> to vector<4x1xf32>
    %217 = vector.extract_strided_slice %203 {offsets = [2, 0], sizes = [1, 256], strides = [1, 1]} : vector<4x256xf32> to vector<1x256xf32>
    %218 = vector.broadcast %216 : vector<4x1xf32> to vector<4x256xf32>
    %219 = vector.broadcast %217 : vector<1x256xf32> to vector<4x256xf32>
    %220 = arith.mulf %218, %219 : vector<4x256xf32>
    %221 = arith.addf %215, %220 : vector<4x256xf32>
    %222 = vector.extract_strided_slice %5 {offsets = [0, 31], sizes = [4, 1], strides = [1, 1]} : vector<4x36xf32> to vector<4x1xf32>
    %223 = vector.extract_strided_slice %203 {offsets = [3, 0], sizes = [1, 256], strides = [1, 1]} : vector<4x256xf32> to vector<1x256xf32>
    %224 = vector.broadcast %222 : vector<4x1xf32> to vector<4x256xf32>
    %225 = vector.broadcast %223 : vector<1x256xf32> to vector<4x256xf32>
    %226 = arith.mulf %224, %225 : vector<4x256xf32>
    %227 = arith.addf %221, %226 : vector<4x256xf32>
    %c239_i32 = arith.constant 239 : i32
    %228 = tpu.dynamic_rotate %4 by %c239_i32 dim 1 : vector<4x256xf32>, i32 -> vector<4x256xf32>
    %c8 = arith.constant 8 : index
    %c0_16 = arith.constant 0 : index
    %229 = vector.load %arg4[%c8, %c0_16] : memref<9x256xf32, #tpu.memory_space<vmem>>, vector<1x256xf32>
    %230 = vector.broadcast %229 : vector<1x256xf32> to vector<4x256xf32>
    %231 = arith.mulf %228, %230 : vector<4x256xf32>
    %232 = vector.extract_strided_slice %5 {offsets = [0, 32], sizes = [4, 1], strides = [1, 1]} : vector<4x36xf32> to vector<4x1xf32>
    %233 = vector.extract_strided_slice %231 {offsets = [0, 0], sizes = [1, 256], strides = [1, 1]} : vector<4x256xf32> to vector<1x256xf32>
    %234 = vector.broadcast %232 : vector<4x1xf32> to vector<4x256xf32>
    %235 = vector.broadcast %233 : vector<1x256xf32> to vector<4x256xf32>
    %236 = arith.mulf %234, %235 : vector<4x256xf32>
    %237 = arith.addf %227, %236 : vector<4x256xf32>
    %238 = vector.extract_strided_slice %5 {offsets = [0, 33], sizes = [4, 1], strides = [1, 1]} : vector<4x36xf32> to vector<4x1xf32>
    %239 = vector.extract_strided_slice %231 {offsets = [1, 0], sizes = [1, 256], strides = [1, 1]} : vector<4x256xf32> to vector<1x256xf32>
    %240 = vector.broadcast %238 : vector<4x1xf32> to vector<4x256xf32>
    %241 = vector.broadcast %239 : vector<1x256xf32> to vector<4x256xf32>
    %242 = arith.mulf %240, %241 : vector<4x256xf32>
    %243 = arith.addf %237, %242 : vector<4x256xf32>
    %244 = vector.extract_strided_slice %5 {offsets = [0, 34], sizes = [4, 1], strides = [1, 1]} : vector<4x36xf32> to vector<4x1xf32>
    %245 = vector.extract_strided_slice %231 {offsets = [2, 0], sizes = [1, 256], strides = [1, 1]} : vector<4x256xf32> to vector<1x256xf32>
    %246 = vector.broadcast %244 : vector<4x1xf32> to vector<4x256xf32>
    %247 = vector.broadcast %245 : vector<1x256xf32> to vector<4x256xf32>
    %248 = arith.mulf %246, %247 : vector<4x256xf32>
    %249 = arith.addf %243, %248 : vector<4x256xf32>
    %250 = vector.extract_strided_slice %5 {offsets = [0, 35], sizes = [4, 1], strides = [1, 1]} : vector<4x36xf32> to vector<4x1xf32>
    %251 = vector.extract_strided_slice %231 {offsets = [3, 0], sizes = [1, 256], strides = [1, 1]} : vector<4x256xf32> to vector<1x256xf32>
    %252 = vector.broadcast %250 : vector<4x1xf32> to vector<4x256xf32>
    %253 = vector.broadcast %251 : vector<1x256xf32> to vector<4x256xf32>
    %254 = arith.mulf %252, %253 : vector<4x256xf32>
    %255 = arith.addf %249, %254 : vector<4x256xf32>
    %256 = vector.broadcast %6 : vector<4x1xf32> to vector<4x256xf32>
    %257 = arith.addf %255, %256 : vector<4x256xf32>
    %c0_17 = arith.constant 0 : index
    %c0_18 = arith.constant 0 : index
    %258 = vector.load %arg10[%c0_17, %c0_18] : memref<4x256xf32, #tpu.memory_space<vmem>>, vector<4x256xf32>
    %259 = arith.mulf %257, %258 : vector<4x256xf32>
    %cst_19 = arith.constant dense<0.000000e+00> : vector<256xf32>
    %260 = vector.multi_reduction <add>, %259, %cst_19 [0] : vector<4x256xf32> to vector<256xf32>
    %261 = vector.shape_cast %260 : vector<256xf32> to vector<1x256xf32>
    %262 = arith.negf %261 : vector<1x256xf32>
    %263 = math.exp %262 : vector<1x256xf32>
    %cst_20 = arith.constant 1.000000e+00 : f32
    %264 = vector.broadcast %cst_20 : f32 to vector<1x256xf32>
    %265 = arith.addf %264, %263 : vector<1x256xf32>
    %266 = arith.divf %264, %265 : vector<1x256xf32>
    %267 = vector.broadcast %266 : vector<1x256xf32> to vector<4x256xf32>
    %268 = arith.mulf %4, %267 : vector<4x256xf32>
    %c0_21 = arith.constant 0 : index
    %c0_22 = arith.constant 0 : index
    %c0_23 = arith.constant 0 : index
    %c0_24 = arith.constant 0 : index
    %269 = vector.load %arg9[%c0_21, %c0_22, %c0_23, %c0_24] : memref<1x1x4x256xf32, #tpu.memory_space<vmem>>, vector<1x1x4x256xf32>
    %270 = vector.shape_cast %269 : vector<1x1x4x256xf32> to vector<4x256xf32>
    %271 = vector.shape_cast %268 : vector<4x256xf32> to vector<1x1x4x256xf32>
    tpu.vector_store %arg9[%c0_21, %c0_22, %c0_23, %c0_24], %271 {strides = array<i32>} : memref<1x1x4x256xf32, #tpu.memory_space<vmem>>, vector<1x1x4x256xf32>,
    return
  }
  func.func @transform_0(%arg0: i32, %arg1: i32) -> (i32, i32, i32, i32) {
    %c1_i32 = arith.constant 1 : i32
    %c0_i32 = arith.constant 0 : i32
    %c0_i32_0 = arith.constant 0 : i32
    %c0_i32_1 = arith.constant 0 : i32
    return %arg0, %c1_i32, %c0_i32, %c0_i32_0 : i32, i32, i32, i32
  }
  func.func @transform_1(%arg0: i32, %arg1: i32) -> (i32, i32, i32, i32) {
    %c0_i32 = arith.constant 0 : i32
    %c0_i32_0 = arith.constant 0 : i32
    %c0_i32_1 = arith.constant 0 : i32
    return %arg0, %arg1, %c0_i32, %c0_i32_0 : i32, i32, i32, i32
  }
  func.func @transform_2(%arg0: i32, %arg1: i32) -> (i32, i32) {
    %c0_i32 = arith.constant 0 : i32
    %c0_i32_0 = arith.constant 0 : i32
    %c0_i32_1 = arith.constant 0 : i32
    return %c0_i32, %c0_i32_0 : i32, i32
  }
  func.func @transform_3(%arg0: i32, %arg1: i32) -> (i32, i32) {
    %c0_i32 = arith.constant 0 : i32
    %c0_i32_0 = arith.constant 0 : i32
    %c0_i32_1 = arith.constant 0 : i32
    return %c0_i32, %c0_i32_0 : i32, i32
  }
  func.func @transform_4(%arg0: i32, %arg1: i32) -> (i32, i32) {
    %c0_i32 = arith.constant 0 : i32
    %c0_i32_0 = arith.constant 0 : i32
    %c0_i32_1 = arith.constant 0 : i32
    return %c0_i32, %c0_i32_0 : i32, i32
  }
  func.func @transform_5(%arg0: i32, %arg1: i32) -> (i32, i32) {
    %c0_i32 = arith.constant 0 : i32
    %c0_i32_0 = arith.constant 0 : i32
    %c0_i32_1 = arith.constant 0 : i32
    return %c0_i32, %c0_i32_0 : i32, i32
  }
  func.func @transform_6(%arg0: i32, %arg1: i32) -> (i32, i32) {
    %c0_i32 = arith.constant 0 : i32
    %c0_i32_0 = arith.constant 0 : i32
    %c0_i32_1 = arith.constant 0 : i32
    return %c0_i32, %c0_i32_0 : i32, i32
  }
  func.func @transform_7(%arg0: i32, %arg1: i32) -> (i32, i32, i32, i32) {
    %c0_i32 = arith.constant 0 : i32
    %c0_i32_0 = arith.constant 0 : i32
    %c0_i32_1 = arith.constant 0 : i32
    return %arg0, %arg1, %c0_i32, %c0_i32_0 : i32, i32, i32, i32
  }
}

</mosaic_0001>

<llo_original>
// kernel: tpu_custom_call.1
$region0: #{tpu_custom_call.1}
  #allocation0 [shape = 'u32[]', space=smem, size = 0x4, offset = 0x4, fixed_abs, tag = 'smem constant byte address 0x4 - core index']
  #allocation1 [shape = 'u32[144,128]{1,0:T(1,128)}', space=vmem, size = 0x12000, scoped, tag = 'internal scratch']
  #allocation2 [shape = 'f32[4,256]{1,0:T(4,128)}', space=vmem, size = 0x1000, scoped, tag = 'scratch operand']
  %s0 = inlined_call_operand.hbm [shape: f32[2,3,4,256], index: 0, kind: input, shape index: {}]
  %s1 = inlined_call_operand.hbm [shape: f32[2,3,4,256], index: 1, kind: input, shape index: {}]
  %s2 = inlined_call_operand.hbm [shape: f32[9,256], index: 2, kind: input, shape index: {}]
  %s3 = inlined_call_operand.vmem [shape: f32[4,36], index: 3, kind: input, shape index: {}]
  %s4 = inlined_call_operand.vmem [shape: f32[4,1], index: 4, kind: input, shape index: {}]
  %s5 = inlined_call_operand.vmem [shape: f32[4,36], index: 5, kind: input, shape index: {}]
  %s6 = inlined_call_operand.vmem [shape: f32[4,1], index: 6, kind: input, shape index: {}]
  %s7 = inlined_call_operand.hbm [shape: f32[2,3,4,256], index: 7, kind: output, shape index: {}]
  %s8 = sld [smem:[#allocation0]]
  $region77: #{tpu_custom_call.1} parent=0
    _
  %s10 = ssub.s32 1, %s8
  %s11 = scalar_select 0, %s10, %s8
  $region1: #{tpu_custom_call.1} parent=0
    #allocation3 [shape = 'u8[8192]{0}', space=vmem, size = 0x2000, scoped, tag = 'input window, operand 0']
    #allocation4 [shape = 's32[2]{0}', space=sflag, size = 0x8, scoped, tag = 'scoped memory for tpu_custom_call.1']
    #allocation5 [shape = 's32[2]{0}', space=sflag, size = 0x8, scoped, tag = 'scoped memory for tpu_custom_call.1']
    #allocation6 [shape = 'u8[8192]{0}', space=vmem, size = 0x2000, scoped, tag = 'input window, operand 1']
    #allocation7 [shape = 's32[2]{0}', space=sflag, size = 0x8, scoped, tag = 'scoped memory for tpu_custom_call.1']
    #allocation8 [shape = 'u8[16384]{0}', space=vmem, size = 0x4000, scoped, tag = 'input window, operand 2, single buffered']
    #allocation9 [shape = 'u8[8192]{0}', space=vmem, size = 0x2000, scoped, tag = 'output window, operand 0']
    %12 = vsyncpa [#allocation4], 0
    %s13 = scalar_lea.sflag [#allocation4], 1
    %14 = vsyncpa %s13, 0
    %15 = vsyncpa [#allocation7], 0
    %s16 = scalar_lea.sflag [#allocation7], 1
    %17 = vsyncpa %s16, 0
    %18 = vsyncpa [#allocation5], 0
    %s19 = scalar_lea.sflag [#allocation5], 1
    %20 = vsyncpa %s19, 0
    loop: start=0, step=1, limit=8
    $region2: #{tpu_custom_call.1} parent=1 // loop_pre_header
      _
    $region3: #{tpu_custom_call.1} parent=1 // loop_header
      %s22 = sphi 0, %s26
      %p23 = scmp.ge.s32.totalorder %s22, 8
      %s29 = sphi 0, %s41
      %s30 = sphi 0, %s37
      %s31 = sphi 0, %s29
      %s32 = sphi 0, %s30
      %s33 = sphi 0, %s31
      %s34 = sphi 0, %s32
      %s44 = sphi 0, %s46
      %s47 = sphi 0, %s44
      %s48 = sphi 0, %s47
      %s64 = sphi 0, %s48
      %s72 = sphi 0, %s74
      %s75 = sphi 0, %s72
      %s76 = sphi 0, %s75
      %s92 = sphi 0, %s76
      %s96 = sphi 0, %s96
      %s98 = sphi 0, %s96
      %s99 = sphi 0, %s98
      %s113 = sphi 0, %s99
      %s117 = sphi 0, %s117
      %s119 = sphi 0, %s117
      %s120 = sphi 0, %s119
      %s134 = sphi 0, %s120
      %s138 = sphi 0, %s138
      %s140 = sphi 0, %s138
      %s141 = sphi 0, %s140
      %s155 = sphi 0, %s141
      %s159 = sphi 0, %s159
      %s161 = sphi 0, %s159
      %s162 = sphi 0, %s161
      %s176 = sphi 0, %s162
      %s180 = sphi 0, %s180
      %s182 = sphi 0, %s180
      %s183 = sphi 0, %s182
      %s197 = sphi 0, %s183
      %s205 = sphi 0, %s207
      %s208 = sphi 0, %s205
      %s209 = sphi 0, %s208
      %s225 = sphi 0, %s209
    $region4: #{tpu_custom_call.1} parent=1 // loop_header_branch
      %25 = sbr.rel (%p23) target = $region8
    $region5: #{tpu_custom_call.1} parent=1 // loop_body
      %s27 = ssub.s32 %s22, 1
      %s28 = ssub.s32 %s22, 2
      %s35 = sadd.s32 1, %s30
      %p36 = scmp.ge.s32.totalorder %s35, 3
      %s37 = scalar_select %p36, 0, %s35
      %s38 = sadd.s32 1, %s29
      %s39 = scalar_select %p36, %s38, %s29
      %p40 = scmp.ge.s32.totalorder %s39, 2
      %s41 = scalar_select %p40, 0, %s39
      %s42 = ssub.s32 %s29, %s41
      %p43 = scmp.eq.s32.totalorder %s42, 0
      %s45 = sadd.s32 %s44, 1
      %s46 = scalar_select %p43, %s44, %s45
      %p49 = pneg %p43
      %p50 = scmp.eq.s32.totalorder %s22, 5
      %p51 = por %p49, %p50
      %p52 = scmp.ne.s32.totalorder %s44, %s47
      %p53 = scmp.eq.s32.totalorder %s22, 0
      %p54 = por %p52, %p53
      %p55 = scmp.ne.s32.totalorder %s44, %s47
      %p56 = scmp.eq.s32.totalorder %s27, 5
      %p57 = por %p55, %p56
      %p58 = scmp.ne.s32.totalorder %s47, %s48
      %p59 = scmp.eq.s32.totalorder %s27, 0
      %p60 = por %p58, %p59
      %p61 = scmp.ne.s32.totalorder %s47, %s48
      %p62 = scmp.eq.s32.totalorder %s28, 5
      %p63 = por %p61, %p62
      %p65 = scmp.ne.s32.totalorder %s48, %s64
      %p66 = scmp.eq.s32.totalorder %s28, 0
      %p67 = por %p65, %p66
      %s68 = ssub.s32 %s29, %s41
      %s69 = ssub.s32 %s30, %s37
      %s70 = sor.u32 %s68, %s69
      %p71 = scmp.eq.s32.totalorder %s70, 0
      %s73 = sadd.s32 %s72, 1
      %s74 = scalar_select %p71, %s72, %s73
      %p77 = pneg %p71
      %p78 = scmp.eq.s32.totalorder %s22, 5
      %p79 = por %p77, %p78
      %p80 = scmp.ne.s32.totalorder %s72, %s75
      %p81 = scmp.eq.s32.totalorder %s22, 0
      %p82 = por %p80, %p81
      %p83 = scmp.ne.s32.totalorder %s72, %s75
      %p84 = scmp.eq.s32.totalorder %s27, 5
      %p85 = por %p83, %p84
      %p86 = scmp.ne.s32.totalorder %s75, %s76
      %p87 = scmp.eq.s32.totalorder %s27, 0
      %p88 = por %p86, %p87
      %p89 = scmp.ne.s32.totalorder %s75, %s76
      %p90 = scmp.eq.s32.totalorder %s28, 5
      %p91 = por %p89, %p90
      %p93 = scmp.ne.s32.totalorder %s76, %s92
      %p94 = scmp.eq.s32.totalorder %s28, 0
      %p95 = por %p93, %p94
      %s97 = sadd.s32 %s96, 1
      %p100 = scmp.eq.s32.totalorder %s22, 5
      %p101 = scmp.ne.s32.totalorder %s96, %s98
      %p102 = scmp.eq.s32.totalorder %s22, 0
      %p103 = por %p101, %p102
      %p104 = scmp.ne.s32.totalorder %s96, %s98
      %p105 = scmp.eq.s32.totalorder %s27, 5
      %p106 = por %p104, %p105
      %p107 = scmp.ne.s32.totalorder %s98, %s99
      %p108 = scmp.eq.s32.totalorder %s27, 0
      %p109 = por %p107, %p108
      %p110 = scmp.ne.s32.totalorder %s98, %s99
      %p111 = scmp.eq.s32.totalorder %s28, 5
      %p112 = por %p110, %p111
      %p114 = scmp.ne.s32.totalorder %s99, %s113
      %p115 = scmp.eq.s32.totalorder %s28, 0
      %p116 = por %p114, %p115
      %s118 = sadd.s32 %s117, 1
      %p121 = scmp.eq.s32.totalorder %s22, 5
      %p122 = scmp.ne.s32.totalorder %s117, %s119
      %p123 = scmp.eq.s32.totalorder %s22, 0
      %p124 = por %p122, %p123
      %p125 = scmp.ne.s32.totalorder %s117, %s119
      %p126 = scmp.eq.s32.totalorder %s27, 5
      %p127 = por %p125, %p126
      %p128 = scmp.ne.s32.totalorder %s119, %s120
      %p129 = scmp.eq.s32.totalorder %s27, 0
      %p130 = por %p128, %p129
      %p131 = scmp.ne.s32.totalorder %s119, %s120
      %p132 = scmp.eq.s32.totalorder %s28, 5
      %p133 = por %p131, %p132
      %p135 = scmp.ne.s32.totalorder %s120, %s134
      %p136 = scmp.eq.s32.totalorder %s28, 0
      %p137 = por %p135, %p136
      %s139 = sadd.s32 %s138, 1
      %p142 = scmp.eq.s32.totalorder %s22, 5
      %p143 = scmp.ne.s32.totalorder %s138, %s140
      %p144 = scmp.eq.s32.totalorder %s22, 0
      %p145 = por %p143, %p144
      %p146 = scmp.ne.s32.totalorder %s138, %s140
      %p147 = scmp.eq.s32.totalorder %s27, 5
      %p148 = por %p146, %p147
      %p149 = scmp.ne.s32.totalorder %s140, %s141
      %p150 = scmp.eq.s32.totalorder %s27, 0
      %p151 = por %p149, %p150
      %p152 = scmp.ne.s32.totalorder %s140, %s141
      %p153 = scmp.eq.s32.totalorder %s28, 5
      %p154 = por %p152, %p153
      %p156 = scmp.ne.s32.totalorder %s141, %s155
      %p157 = scmp.eq.s32.totalorder %s28, 0
      %p158 = por %p156, %p157
      %s160 = sadd.s32 %s159, 1
      %p163 = scmp.eq.s32.totalorder %s22, 5
      %p164 = scmp.ne.s32.totalorder %s159, %s161
      %p165 = scmp.eq.s32.totalorder %s22, 0
      %p166 = por %p164, %p165
      %p167 = scmp.ne.s32.totalorder %s159, %s161
      %p168 = scmp.eq.s32.totalorder %s27, 5
      %p169 = por %p167, %p168
      %p170 = scmp.ne.s32.totalorder %s161, %s162
      %p171 = scmp.eq.s32.totalorder %s27, 0
      %p172 = por %p170, %p171
      %p173 = scmp.ne.s32.totalorder %s161, %s162
      %p174 = scmp.eq.s32.totalorder %s28, 5
      %p175 = por %p173, %p174
      %p177 = scmp.ne.s32.totalorder %s162, %s176
      %p178 = scmp.eq.s32.totalorder %s28, 0
      %p179 = por %p177, %p178
      %s181 = sadd.s32 %s180, 1
      %p184 = scmp.eq.s32.totalorder %s22, 5
      %p185 = scmp.ne.s32.totalorder %s180, %s182
      %p186 = scmp.eq.s32.totalorder %s22, 0
      %p187 = por %p185, %p186
      %p188 = scmp.ne.s32.totalorder %s180, %s182
      %p189 = scmp.eq.s32.totalorder %s27, 5
      %p190 = por %p188, %p189
      %p191 = scmp.ne.s32.totalorder %s182, %s183
      %p192 = scmp.eq.s32.totalorder %s27, 0
      %p193 = por %p191, %p192
      %p194 = scmp.ne.s32.totalorder %s182, %s183
      %p195 = scmp.eq.s32.totalorder %s28, 5
      %p196 = por %p194, %p195
      %p198 = scmp.ne.s32.totalorder %s183, %s197
      %p199 = scmp.eq.s32.totalorder %s28, 0
      %p200 = por %p198, %p199
      %s201 = ssub.s32 %s29, %s41
      %s202 = ssub.s32 %s30, %s37
      %s203 = sor.u32 %s201, %s202
      %p204 = scmp.eq.s32.totalorder %s203, 0
      %s206 = sadd.s32 %s205, 1
      %s207 = scalar_select %p204, %s205, %s206
      %p210 = pneg %p204
      %p211 = scmp.eq.s32.totalorder %s22, 5
      %p212 = por %p210, %p211
      %p213 = scmp.ne.s32.totalorder %s205, %s208
      %p214 = scmp.eq.s32.totalorder %s22, 0
      %p215 = por %p213, %p214
      %p216 = scmp.ne.s32.totalorder %s205, %s208
      %p217 = scmp.eq.s32.totalorder %s27, 5
      %p218 = por %p216, %p217
      %p219 = scmp.ne.s32.totalorder %s208, %s209
      %p220 = scmp.eq.s32.totalorder %s27, 0
      %p221 = por %p219, %p220
      %p222 = scmp.ne.s32.totalorder %s208, %s209
      %p223 = scmp.eq.s32.totalorder %s28, 5
      %p224 = por %p222, %p223
      %p226 = scmp.ne.s32.totalorder %s209, %s225
      %p227 = scmp.eq.s32.totalorder %s28, 0
      %p228 = por %p226, %p227
      %p229 = scmp.le.s32.totalorder 1, %s22
      %p230 = scmp.lt.s32.totalorder %s22, 7
      %p231 = pnand %p229, %p230
      %p232 = pneg %p231
      // Predicated region
      $region9: #{tpu_custom_call.1} parent=5 // pred_check
        _
      $region10: #{tpu_custom_call.1} parent=5 // pred_check_branch
        %234 = sbr.rel (%p231) target = $region12
      $region11: #{tpu_custom_call.1} parent=5 // pred_region
        %s235 = ssub.s32 %s22, 1
        // Predicated region
        $region13: #{tpu_custom_call.1} parent=11 // pred_check
          %p236 = pneg %p109
        $region14: #{tpu_custom_call.1} parent=11 // pred_check_branch
          %238 = sbr.rel (%p236) target = $region16
        $region15: #{tpu_custom_call.1} parent=11 // pred_region
          %s240 = ssub.s32 512, 512
          %241 = vsyncadd [#allocation7], %s240
          %s242 = sshll.u32 [#allocation8], 4
          %s243 = int_to_ptr.vmem [resolvable:$true] %s242
          %248 = dma.hbm_to_vmem [thread:$0]  %s2, 512, %s243, [#allocation7], 256, 256, 16
        $region16: #{tpu_custom_call.1} parent=11 // pred_fallthru
          _
        // Predicated region
        $region17: #{tpu_custom_call.1} parent=11 // pred_check
          %p249 = pneg %p130
        $region18: #{tpu_custom_call.1} parent=11 // pred_check_branch
          %251 = sbr.rel (%p249) target = $region20
        $region19: #{tpu_custom_call.1} parent=11 // pred_region
          _
        $region20: #{tpu_custom_call.1} parent=11 // pred_fallthru
          _
        // Predicated region
        $region21: #{tpu_custom_call.1} parent=11 // pred_check
          %p252 = pneg %p151
        $region22: #{tpu_custom_call.1} parent=11 // pred_check_branch
          %254 = sbr.rel (%p252) target = $region24
        $region23: #{tpu_custom_call.1} parent=11 // pred_region
          _
        $region24: #{tpu_custom_call.1} parent=11 // pred_fallthru
          _
        // Predicated region
        $region25: #{tpu_custom_call.1} parent=11 // pred_check
          %p255 = pneg %p172
        $region26: #{tpu_custom_call.1} parent=11 // pred_check_branch
          %257 = sbr.rel (%p255) target = $region28
        $region27: #{tpu_custom_call.1} parent=11 // pred_region
          _
        $region28: #{tpu_custom_call.1} parent=11 // pred_fallthru
          _
        // Predicated region
        $region29: #{tpu_custom_call.1} parent=11 // pred_check
          %p258 = pneg %p193
        $region30: #{tpu_custom_call.1} parent=11 // pred_check_branch
          %260 = sbr.rel (%p258) target = $region32
        $region31: #{tpu_custom_call.1} parent=11 // pred_region
          _
        $region32: #{tpu_custom_call.1} parent=11 // pred_fallthru
          _
      $region12: #{tpu_custom_call.1} parent=5 // pred_fallthru
        _
      %p261 = scmp.lt.s32.totalorder %s22, 6
      // Predicated region
      $region33: #{tpu_custom_call.1} parent=5 // pred_check
        %p262 = pneg %p261
      $region34: #{tpu_custom_call.1} parent=5 // pred_check_branch
        %264 = sbr.rel (%p262) target = $region36
      $region35: #{tpu_custom_call.1} parent=5 // pred_region
        // Predicated region
        $region37: #{tpu_custom_call.1} parent=35 // pred_check
          %p265 = pneg %p54
        $region38: #{tpu_custom_call.1} parent=35 // pred_check_branch
          %267 = sbr.rel (%p265) target = $region40
        $region39: #{tpu_custom_call.1} parent=35 // pred_region
          %s268 = sand.u32 %s44, 1
          %s269 = scalar_lea.sflag [#allocation4], %s268
          %s270 = sand.u32 %s44, 1
          %s271 = smul.addr %s270, 8
          %s272 = scalar_lea.vmem [#allocation3], %s271
          %s274 = ssub.s32 128, 128
          %275 = vsyncadd %s269, %s274
          %s276 = smul.addr %s29, 6
          %s277 = sadd.s32 2, %s276
          %s278 = smul.addr %s277, 64
          %s279 = scalar_lea.hbm %s0, %s278
          %s281 = sshll.u32 %s272, 4
          %s282 = int_to_ptr.vmem [resolvable:$true] %s281
          %284 = dma.hbm_to_vmem [thread:$0]  %s279, 128, %s282, %s269
        $region40: #{tpu_custom_call.1} parent=35 // pred_fallthru
          _
        // Predicated region
        $region41: #{tpu_custom_call.1} parent=35 // pred_check
          %p285 = pneg %p82
        $region42: #{tpu_custom_call.1} parent=35 // pred_check_branch
          %287 = sbr.rel (%p285) target = $region44
        $region43: #{tpu_custom_call.1} parent=35 // pred_region
          %s288 = sand.u32 %s22, 1
          %s289 = scalar_lea.sflag [#allocation7], %s288
          %s290 = sand.u32 %s72, 1
          %s291 = smul.addr %s290, 8
          %s292 = scalar_lea.vmem [#allocation6], %s291
          %s294 = ssub.s32 128, 128
          %295 = vsyncadd %s289, %s294
          %s296 = smul.addr %s30, 2
          %s297 = smul.addr %s29, 6
          %s298 = sadd.s32 %s296, %s297
          %s299 = smul.addr %s298, 64
          %s300 = scalar_lea.hbm %s1, %s299
          %s302 = sshll.u32 %s292, 4
          %s303 = int_to_ptr.vmem [resolvable:$true] %s302
          %305 = dma.hbm_to_vmem [thread:$0]  %s300, 128, %s303, %s289
        $region44: #{tpu_custom_call.1} parent=35 // pred_fallthru
          _
      $region36: #{tpu_custom_call.1} parent=5 // pred_fallthru
        _
      %p306 = scmp.le.s32.totalorder 1, %s22
      %p307 = scmp.lt.s32.totalorder %s22, 7
      %p308 = pnand %p306, %p307
      %p309 = pneg %p308
      // Predicated region
      $region45: #{tpu_custom_call.1} parent=5 // pred_check
        _
      $region46: #{tpu_custom_call.1} parent=5 // pred_check_branch
        %311 = sbr.rel (%p308) target = $region48
      $region47: #{tpu_custom_call.1} parent=5 // pred_region
        %s312 = ssub.s32 %s22, 1
        %s313 = sand.u32 %s47, 1
        %s314 = scalar_lea.sflag [#allocation4], %s313
        %s315 = sand.u32 %s47, 1
        %s316 = smul.addr %s315, 8
        %s317 = scalar_lea.vmem [#allocation3], %s316
        // Predicated region
        $region49: #{tpu_custom_call.1} parent=47 // pred_check
          %p318 = pneg %p60
        $region50: #{tpu_custom_call.1} parent=47 // pred_check_branch
          %320 = sbr.rel (%p318) target = $region52
        $region51: #{tpu_custom_call.1} parent=47 // pred_region
          %321 = dma.done %s314, 128
        $region52: #{tpu_custom_call.1} parent=47 // pred_fallthru
          _
        %s322 = sand.u32 %s27, 1
        %s323 = scalar_lea.sflag [#allocation7], %s322
        %s324 = sand.u32 %s75, 1
        %s325 = smul.addr %s324, 8
        %s326 = scalar_lea.vmem [#allocation6], %s325
        // Predicated region
        $region53: #{tpu_custom_call.1} parent=47 // pred_check
          %p327 = pneg %p88
        $region54: #{tpu_custom_call.1} parent=47 // pred_check_branch
          %329 = sbr.rel (%p327) target = $region56
        $region55: #{tpu_custom_call.1} parent=47 // pred_region
          %330 = dma.done %s323, 128
        $region56: #{tpu_custom_call.1} parent=47 // pred_fallthru
          _
        // Predicated region
        $region57: #{tpu_custom_call.1} parent=47 // pred_check
          %p331 = pneg %p109
        $region58: #{tpu_custom_call.1} parent=47 // pred_check_branch
          %333 = sbr.rel (%p331) target = $region60
        $region59: #{tpu_custom_call.1} parent=47 // pred_region
          %334 = dma.done [#allocation7], 512
        $region60: #{tpu_custom_call.1} parent=47 // pred_fallthru
          _
        %s335 = sand.u32 %s47, 1
        %s336 = scalar_lea.sflag [#allocation4], %s335
        %s337 = sand.u32 %s47, 1
        %s338 = smul.addr %s337, 8
        %s339 = scalar_lea.vmem [#allocation3], %s338
        %p340 = pneg %p60
        %p341 = pneg %p57
        %s342 = sand.u32 %s27, 1
        %s343 = scalar_lea.sflag [#allocation7], %s342
        %s344 = sand.u32 %s75, 1
        %s345 = smul.addr %s344, 8
        %s346 = scalar_lea.vmem [#allocation6], %s345
        %p347 = pneg %p88
        %p348 = pneg %p85
        %p349 = pneg %p109
        %p350 = pneg %p106
        %p351 = pneg %p130
        %p352 = pneg %p127
        %p353 = pneg %p151
        %p354 = pneg %p148
        %p355 = pneg %p172
        %p356 = pneg %p169
        %p357 = pneg %p193
        %p358 = pneg %p190
        %p359 = pneg %p221
        %p360 = pneg %p218
        %s361 = sand.u32 %s208, 1
        %s362 = scalar_lea.sflag [#allocation5], %s361
        %s363 = sand.u32 %s208, 1
        %s364 = smul.addr %s363, 8
        %s365 = scalar_lea.vmem [#allocation9], %s364
        %p366 = scmp.eq.s32.totalorder %s32, 0
        // Predicated region
        $region61: #{tpu_custom_call.1} parent=47 // pred_check
          %p367 = pneg %p366
        $region62: #{tpu_custom_call.1} parent=47 // pred_check_branch
          %369 = sbr.rel (%p367) target = $region64
        $region63: #{tpu_custom_call.1} parent=47 // pred_region
          %v370 = vld [vmem:[%s317] sm:$0xff]
          %v371 = vld [vmem:[%s3] sm:$0xf]
          %v372 = vld [vmem:[%s4] sm:$0xf]
          %v374 = vcombine.high %v370, %v370
          %376 = vrot.lane.b32.xlu0 %v370, 17
          %v377 = vpop.permute.xlu0 %376
          %378 = vrot.lane.b32.xlu0 %v374, 17
          %v379 = vpop.permute.xlu0 %378
          %v380 = vlaneseq
          %v381 = vand.u32 %v380, 127
          %vm382 = vcmp.lt.s32.totalorder %v381, 17
          %v383 = vsel %vm382, %v377, %v379
          %v384 = vsel %vm382, %v379, %v377
          %v385 = vld [vmem:[#allocation8] ss:$8 sm:$0x3]
          %v387 = vlaneseq
          %v388 = vshrl.u32 %v387, 7
          %v389 = vsub.s32 0, %v388
          %v390 = vrot.slane %v385, %v389
          %v391 = vlaneseq
          %v392 = vshrl.u32 %v391, 7
          %v393 = vsub.s32 1, %v392
          %v394 = vrot.slane %v385, %v393
          %v397 = vmul.f32 %v384, %v390
          %v398 = vmul.f32 %v383, %v394
          %400 = vset.pattern.permute.xlu0 0
          %401 = vperm.xlu0 %400, %v371
          %v402 = vpop.permute.xlu0 %401
          %v404 = vlaneseq
          %v405 = vshrl.u32 %v404, 7
          %v406 = vsub.s32 0, %v405
          %v407 = vrot.slane %v397, %v406
          %v408 = vlaneseq
          %v409 = vshrl.u32 %v408, 7
          %v410 = vsub.s32 0, %v409
          %v411 = vrot.slane %v398, %v410
          %v412 = vmul.f32 %v402, %v407
          %v413 = vmul.f32 %v402, %v411
          %v414 = vadd.f32 %v412, 0.0
          %v415 = vadd.f32 %v413, 0.0
          %416 = vset.pattern.permute.xlu0 1
          %417 = vperm.xlu0 %416, %v371
          %v418 = vpop.permute.xlu0 %417
          %v420 = vlaneseq
          %v421 = vshrl.u32 %v420, 7
          %v422 = vsub.s32 1, %v421
          %v423 = vrot.slane %v397, %v422
          %v424 = vlaneseq
          %v425 = vshrl.u32 %v424, 7
          %v426 = vsub.s32 1, %v425
          %v427 = vrot.slane %v398, %v426
          %v428 = vmul.f32 %v418, %v423
          %v429 = vmul.f32 %v418, %v427
          %v430 = vadd.f32 %v414, %v428
          %v431 = vadd.f32 %v415, %v429
          %432 = vset.pattern.permute.xlu0 2
          %433 = vperm.xlu0 %432, %v371
          %v434 = vpop.permute.xlu0 %433
          %v436 = vlaneseq
          %v437 = vshrl.u32 %v436, 7
          %v438 = vsub.s32 2, %v437
          %v439 = vrot.slane %v397, %v438
          %v440 = vlaneseq
          %v441 = vshrl.u32 %v440, 7
          %v442 = vsub.s32 2, %v441
          %v443 = vrot.slane %v398, %v442
          %v444 = vmul.f32 %v434, %v439
          %v445 = vmul.f32 %v434, %v443
          %v446 = vadd.f32 %v430, %v444
          %v447 = vadd.f32 %v431, %v445
          %448 = vset.pattern.permute.xlu0 3
          %449 = vperm.xlu0 %448, %v371
          %v450 = vpop.permute.xlu0 %449
          %v452 = vlaneseq
          %v453 = vshrl.u32 %v452, 7
          %v454 = vsub.s32 3, %v453
          %v455 = vrot.slane %v397, %v454
          %v456 = vlaneseq
          %v457 = vshrl.u32 %v456, 7
          %v458 = vsub.s32 3, %v457
          %v459 = vrot.slane %v398, %v458
          %v460 = vmul.f32 %v450, %v455
          %v461 = vmul.f32 %v450, %v459
          %v462 = vadd.f32 %v446, %v460
          %v463 = vadd.f32 %v447, %v461
          %464 = vrot.lane.b32.xlu0 %v370, 16
          %v465 = vpop.permute.xlu0 %464
          %466 = vrot.lane.b32.xlu0 %v374, 16
          %v467 = vpop.permute.xlu0 %466
          %vm468 = vcmp.lt.s32.totalorder %v381, 16
          %v469 = vsel %vm468, %v465, %v467
          %v470 = vsel %vm468, %v467, %v465
          %s471 = scalar_lea.vmem [#allocation8], 1
          %v472 = vld [vmem:[%s471] ss:$8 sm:$0x3]
          %v474 = vlaneseq
          %v475 = vshrl.u32 %v474, 7
          %v476 = vsub.s32 0, %v475
          %v477 = vrot.slane %v472, %v476
          %v478 = vlaneseq
          %v479 = vshrl.u32 %v478, 7
          %v480 = vsub.s32 1, %v479
          %v481 = vrot.slane %v472, %v480
          %v484 = vmul.f32 %v470, %v477
          %v485 = vmul.f32 %v469, %v481
          %486 = vset.pattern.permute.xlu0 4
          %487 = vperm.xlu0 %486, %v371
          %v488 = vpop.permute.xlu0 %487
          %v490 = vlaneseq
          %v491 = vshrl.u32 %v490, 7
          %v492 = vsub.s32 0, %v491
          %v493 = vrot.slane %v484, %v492
          %v494 = vlaneseq
          %v495 = vshrl.u32 %v494, 7
          %v496 = vsub.s32 0, %v495
          %v497 = vrot.slane %v485, %v496
          %v498 = vmul.f32 %v488, %v493
          %v499 = vmul.f32 %v488, %v497
          %v500 = vadd.f32 %v462, %v498
          %v501 = vadd.f32 %v463, %v499
          %502 = vset.pattern.permute.xlu0 5
          %503 = vperm.xlu0 %502, %v371
          %v504 = vpop.permute.xlu0 %503
          %v506 = vlaneseq
          %v507 = vshrl.u32 %v506, 7
          %v508 = vsub.s32 1, %v507
          %v509 = vrot.slane %v484, %v508
          %v510 = vlaneseq
          %v511 = vshrl.u32 %v510, 7
          %v512 = vsub.s32 1, %v511
          %v513 = vrot.slane %v485, %v512
          %v514 = vmul.f32 %v504, %v509
          %v515 = vmul.f32 %v504, %v513
          %v516 = vadd.f32 %v500, %v514
          %v517 = vadd.f32 %v501, %v515
          %518 = vset.pattern.permute.xlu0 6
          %519 = vperm.xlu0 %518, %v371
          %v520 = vpop.permute.xlu0 %519
          %v522 = vlaneseq
          %v523 = vshrl.u32 %v522, 7
          %v524 = vsub.s32 2, %v523
          %v525 = vrot.slane %v484, %v524
          %v526 = vlaneseq
          %v527 = vshrl.u32 %v526, 7
          %v528 = vsub.s32 2, %v527
          %v529 = vrot.slane %v485, %v528
          %v530 = vmul.f32 %v520, %v525
          %v531 = vmul.f32 %v520, %v529
          %v532 = vadd.f32 %v516, %v530
          %v533 = vadd.f32 %v517, %v531
          %534 = vset.pattern.permute.xlu0 7
          %535 = vperm.xlu0 %534, %v371
          %v536 = vpop.permute.xlu0 %535
          %v538 = vlaneseq
          %v539 = vshrl.u32 %v538, 7
          %v540 = vsub.s32 3, %v539
          %v541 = vrot.slane %v484, %v540
          %v542 = vlaneseq
          %v543 = vshrl.u32 %v542, 7
          %v544 = vsub.s32 3, %v543
          %v545 = vrot.slane %v485, %v544
          %v546 = vmul.f32 %v536, %v541
          %v547 = vmul.f32 %v536, %v545
          %v548 = vadd.f32 %v532, %v546
          %v549 = vadd.f32 %v533, %v547
          %550 = vrot.lane.b32.xlu0 %v370, 15
          %v551 = vpop.permute.xlu0 %550
          %552 = vrot.lane.b32.xlu0 %v374, 15
          %v553 = vpop.permute.xlu0 %552
          %vm554 = vcmp.lt.s32.totalorder %v381, 15
          %v555 = vsel %vm554, %v551, %v553
          %v556 = vsel %vm554, %v553, %v551
          %s557 = scalar_lea.vmem [#allocation8], 2
          %v558 = vld [vmem:[%s557] ss:$8 sm:$0x3]
          %v560 = vlaneseq
          %v561 = vshrl.u32 %v560, 7
          %v562 = vsub.s32 0, %v561
          %v563 = vrot.slane %v558, %v562
          %v564 = vlaneseq
          %v565 = vshrl.u32 %v564, 7
          %v566 = vsub.s32 1, %v565
          %v567 = vrot.slane %v558, %v566
          %v570 = vmul.f32 %v556, %v563
          %v571 = vmul.f32 %v555, %v567
          %572 = vset.pattern.permute.xlu0 8
          %573 = vperm.xlu0 %572, %v371
          %v574 = vpop.permute.xlu0 %573
          %v576 = vlaneseq
          %v577 = vshrl.u32 %v576, 7
          %v578 = vsub.s32 0, %v577
          %v579 = vrot.slane %v570, %v578
          %v580 = vlaneseq
          %v581 = vshrl.u32 %v580, 7
          %v582 = vsub.s32 0, %v581
          %v583 = vrot.slane %v571, %v582
          %v584 = vmul.f32 %v574, %v579
          %v585 = vmul.f32 %v574, %v583
          %v586 = vadd.f32 %v548, %v584
          %v587 = vadd.f32 %v549, %v585
          %588 = vset.pattern.permute.xlu0 9
          %589 = vperm.xlu0 %588, %v371
          %v590 = vpop.permute.xlu0 %589
          %v592 = vlaneseq
          %v593 = vshrl.u32 %v592, 7
          %v594 = vsub.s32 1, %v593
          %v595 = vrot.slane %v570, %v594
          %v596 = vlaneseq
          %v597 = vshrl.u32 %v596, 7
          %v598 = vsub.s32 1, %v597
          %v599 = vrot.slane %v571, %v598
          %v600 = vmul.f32 %v590, %v595
          %v601 = vmul.f32 %v590, %v599
          %v602 = vadd.f32 %v586, %v600
          %v603 = vadd.f32 %v587, %v601
          %604 = vset.pattern.permute.xlu0 10
          %605 = vperm.xlu0 %604, %v371
          %v606 = vpop.permute.xlu0 %605
          %v608 = vlaneseq
          %v609 = vshrl.u32 %v608, 7
          %v610 = vsub.s32 2, %v609
          %v611 = vrot.slane %v570, %v610
          %v612 = vlaneseq
          %v613 = vshrl.u32 %v612, 7
          %v614 = vsub.s32 2, %v613
          %v615 = vrot.slane %v571, %v614
          %v616 = vmul.f32 %v606, %v611
          %v617 = vmul.f32 %v606, %v615
          %v618 = vadd.f32 %v602, %v616
          %v619 = vadd.f32 %v603, %v617
          %620 = vset.pattern.permute.xlu0 11
          %621 = vperm.xlu0 %620, %v371
          %v622 = vpop.permute.xlu0 %621
          %v624 = vlaneseq
          %v625 = vshrl.u32 %v624, 7
          %v626 = vsub.s32 3, %v625
          %v627 = vrot.slane %v570, %v626
          %v628 = vlaneseq
          %v629 = vshrl.u32 %v628, 7
          %v630 = vsub.s32 3, %v629
          %v631 = vrot.slane %v571, %v630
          %v632 = vmul.f32 %v622, %v627
          %v633 = vmul.f32 %v622, %v631
          %v634 = vadd.f32 %v618, %v632
          %v635 = vadd.f32 %v619, %v633
          %636 = vrot.lane.b32.xlu0 %v370, 1
          %v637 = vpop.permute.xlu0 %636
          %638 = vrot.lane.b32.xlu0 %v374, 1
          %v639 = vpop.permute.xlu0 %638
          %vm640 = vcmp.lt.s32.totalorder %v381, 1
          %v641 = vsel %vm640, %v637, %v639
          %v642 = vsel %vm640, %v639, %v637
          %s643 = scalar_lea.vmem [#allocation8], 3
          %v644 = vld [vmem:[%s643] ss:$8 sm:$0x3]
          %v646 = vlaneseq
          %v647 = vshrl.u32 %v646, 7
          %v648 = vsub.s32 0, %v647
          %v649 = vrot.slane %v644, %v648
          %v650 = vlaneseq
          %v651 = vshrl.u32 %v650, 7
          %v652 = vsub.s32 1, %v651
          %v653 = vrot.slane %v644, %v652
          %v656 = vmul.f32 %v642, %v649
          %v657 = vmul.f32 %v641, %v653
          %658 = vset.pattern.permute.xlu0 12
          %659 = vperm.xlu0 %658, %v371
          %v660 = vpop.permute.xlu0 %659
          %v662 = vlaneseq
          %v663 = vshrl.u32 %v662, 7
          %v664 = vsub.s32 0, %v663
          %v665 = vrot.slane %v656, %v664
          %v666 = vlaneseq
          %v667 = vshrl.u32 %v666, 7
          %v668 = vsub.s32 0, %v667
          %v669 = vrot.slane %v657, %v668
          %v670 = vmul.f32 %v660, %v665
          %v671 = vmul.f32 %v660, %v669
          %v672 = vadd.f32 %v634, %v670
          %v673 = vadd.f32 %v635, %v671
          %674 = vset.pattern.permute.xlu0 13
          %675 = vperm.xlu0 %674, %v371
          %v676 = vpop.permute.xlu0 %675
          %v678 = vlaneseq
          %v679 = vshrl.u32 %v678, 7
          %v680 = vsub.s32 1, %v679
          %v681 = vrot.slane %v656, %v680
          %v682 = vlaneseq
          %v683 = vshrl.u32 %v682, 7
          %v684 = vsub.s32 1, %v683
          %v685 = vrot.slane %v657, %v684
          %v686 = vmul.f32 %v676, %v681
          %v687 = vmul.f32 %v676, %v685
          %v688 = vadd.f32 %v672, %v686
          %v689 = vadd.f32 %v673, %v687
          %690 = vset.pattern.permute.xlu0 14
          %691 = vperm.xlu0 %690, %v371
          %v692 = vpop.permute.xlu0 %691
          %v694 = vlaneseq
          %v695 = vshrl.u32 %v694, 7
          %v696 = vsub.s32 2, %v695
          %v697 = vrot.slane %v656, %v696
          %v698 = vlaneseq
          %v699 = vshrl.u32 %v698, 7
          %v700 = vsub.s32 2, %v699
          %v701 = vrot.slane %v657, %v700
          %v702 = vmul.f32 %v692, %v697
          %v703 = vmul.f32 %v692, %v701
          %v704 = vadd.f32 %v688, %v702
          %v705 = vadd.f32 %v689, %v703
          %706 = vset.pattern.permute.xlu0 15
          %707 = vperm.xlu0 %706, %v371
          %v708 = vpop.permute.xlu0 %707
          %v710 = vlaneseq
          %v711 = vshrl.u32 %v710, 7
          %v712 = vsub.s32 3, %v711
          %v713 = vrot.slane %v656, %v712
          %v714 = vlaneseq
          %v715 = vshrl.u32 %v714, 7
          %v716 = vsub.s32 3, %v715
          %v717 = vrot.slane %v657, %v716
          %v718 = vmul.f32 %v708, %v713
          %v719 = vmul.f32 %v708, %v717
          %v720 = vadd.f32 %v704, %v718
          %v721 = vadd.f32 %v705, %v719
          %722 = vset.pattern.permute.xlu0 16
          %723 = vperm.xlu0 %722, %v371
          %v724 = vpop.permute.xlu0 %723
          %v726 = vlaneseq
          %v727 = vshrl.u32 %v726, 7
          %v728 = vsub.s32 0, %v727
          %v729 = vrot.slane %v370, %v728
          %v730 = vlaneseq
          %v731 = vshrl.u32 %v730, 7
          %v732 = vsub.s32 4, %v731
          %v733 = vrot.slane %v370, %v732
          %v736 = vlaneseq
          %v737 = vshrl.u32 %v736, 7
          %v738 = vsub.s32 0, %v737
          %v739 = vrot.slane %v729, %v738
          %v740 = vlaneseq
          %v741 = vshrl.u32 %v740, 7
          %v742 = vsub.s32 0, %v741
          %v743 = vrot.slane %v733, %v742
          %v744 = vmul.f32 %v724, %v739
          %v745 = vmul.f32 %v724, %v743
          %v746 = vadd.f32 %v720, %v744
          %v747 = vadd.f32 %v721, %v745
          %748 = vset.pattern.permute.xlu0 17
          %749 = vperm.xlu0 %748, %v371
          %v750 = vpop.permute.xlu0 %749
          %v752 = vlaneseq
          %v753 = vshrl.u32 %v752, 7
          %v754 = vsub.s32 1, %v753
          %v755 = vrot.slane %v370, %v754
          %v756 = vlaneseq
          %v757 = vshrl.u32 %v756, 7
          %v758 = vsub.s32 5, %v757
          %v759 = vrot.slane %v370, %v758
          %v762 = vlaneseq
          %v763 = vshrl.u32 %v762, 7
          %v764 = vsub.s32 1, %v763
          %v765 = vrot.slane %v755, %v764
          %v766 = vlaneseq
          %v767 = vshrl.u32 %v766, 7
          %v768 = vsub.s32 1, %v767
          %v769 = vrot.slane %v759, %v768
          %v770 = vmul.f32 %v750, %v765
          %v771 = vmul.f32 %v750, %v769
          %v772 = vadd.f32 %v746, %v770
          %v773 = vadd.f32 %v747, %v771
          %774 = vset.pattern.permute.xlu0 18
          %775 = vperm.xlu0 %774, %v371
          %v776 = vpop.permute.xlu0 %775
          %v778 = vlaneseq
          %v779 = vshrl.u32 %v778, 7
          %v780 = vsub.s32 2, %v779
          %v781 = vrot.slane %v370, %v780
          %v782 = vlaneseq
          %v783 = vshrl.u32 %v782, 7
          %v784 = vsub.s32 6, %v783
          %v785 = vrot.slane %v370, %v784
          %v788 = vlaneseq
          %v789 = vshrl.u32 %v788, 7
          %v790 = vsub.s32 2, %v789
          %v791 = vrot.slane %v781, %v790
          %v792 = vlaneseq
          %v793 = vshrl.u32 %v792, 7
          %v794 = vsub.s32 2, %v793
          %v795 = vrot.slane %v785, %v794
          %v796 = vmul.f32 %v776, %v791
          %v797 = vmul.f32 %v776, %v795
          %v798 = vadd.f32 %v772, %v796
          %v799 = vadd.f32 %v773, %v797
          %800 = vset.pattern.permute.xlu0 19
          %801 = vperm.xlu0 %800, %v371
          %v802 = vpop.permute.xlu0 %801
          %v804 = vlaneseq
          %v805 = vshrl.u32 %v804, 7
          %v806 = vsub.s32 3, %v805
          %v807 = vrot.slane %v370, %v806
          %v808 = vlaneseq
          %v809 = vshrl.u32 %v808, 7
          %v810 = vsub.s32 7, %v809
          %v811 = vrot.slane %v370, %v810
          %v814 = vlaneseq
          %v815 = vshrl.u32 %v814, 7
          %v816 = vsub.s32 3, %v815
          %v817 = vrot.slane %v807, %v816
          %v818 = vlaneseq
          %v819 = vshrl.u32 %v818, 7
          %v820 = vsub.s32 3, %v819
          %v821 = vrot.slane %v811, %v820
          %v822 = vmul.f32 %v802, %v817
          %v823 = vmul.f32 %v802, %v821
          %v824 = vadd.f32 %v798, %v822
          %v825 = vadd.f32 %v799, %v823
          %826 = vrot.lane.b32.xlu0 %v370, 127
          %v827 = vpop.permute.xlu0 %826
          %828 = vrot.lane.b32.xlu0 %v374, 127
          %v829 = vpop.permute.xlu0 %828
          %vm830 = vcmp.lt.s32.totalorder %v381, 127
          %v831 = vsel %vm830, %v827, %v829
          %v832 = vsel %vm830, %v829, %v827
          %s833 = scalar_lea.vmem [#allocation8], 5
          %v834 = vld [vmem:[%s833] ss:$8 sm:$0x3]
          %v836 = vlaneseq
          %v837 = vshrl.u32 %v836, 7
          %v838 = vsub.s32 0, %v837
          %v839 = vrot.slane %v834, %v838
          %v840 = vlaneseq
          %v841 = vshrl.u32 %v840, 7
          %v842 = vsub.s32 1, %v841
          %v843 = vrot.slane %v834, %v842
          %v846 = vmul.f32 %v831, %v839
          %v847 = vmul.f32 %v832, %v843
          %848 = vset.pattern.permute.xlu0 20
          %849 = vperm.xlu0 %848, %v371
          %v850 = vpop.permute.xlu0 %849
          %v852 = vlaneseq
          %v853 = vshrl.u32 %v852, 7
          %v854 = vsub.s32 0, %v853
          %v855 = vrot.slane %v846, %v854
          %v856 = vlaneseq
          %v857 = vshrl.u32 %v856, 7
          %v858 = vsub.s32 0, %v857
          %v859 = vrot.slane %v847, %v858
          %v860 = vmul.f32 %v850, %v855
          %v861 = vmul.f32 %v850, %v859
          %v862 = vadd.f32 %v824, %v860
          %v863 = vadd.f32 %v825, %v861
          %864 = vset.pattern.permute.xlu0 21
          %865 = vperm.xlu0 %864, %v371
          %v866 = vpop.permute.xlu0 %865
          %v868 = vlaneseq
          %v869 = vshrl.u32 %v868, 7
          %v870 = vsub.s32 1, %v869
          %v871 = vrot.slane %v846, %v870
          %v872 = vlaneseq
          %v873 = vshrl.u32 %v872, 7
          %v874 = vsub.s32 1, %v873
          %v875 = vrot.slane %v847, %v874
          %v876 = vmul.f32 %v866, %v871
          %v877 = vmul.f32 %v866, %v875
          %v878 = vadd.f32 %v862, %v876
          %v879 = vadd.f32 %v863, %v877
          %880 = vset.pattern.permute.xlu0 22
          %881 = vperm.xlu0 %880, %v371
          %v882 = vpop.permute.xlu0 %881
          %v884 = vlaneseq
          %v885 = vshrl.u32 %v884, 7
          %v886 = vsub.s32 2, %v885
          %v887 = vrot.slane %v846, %v886
          %v888 = vlaneseq
          %v889 = vshrl.u32 %v888, 7
          %v890 = vsub.s32 2, %v889
          %v891 = vrot.slane %v847, %v890
          %v892 = vmul.f32 %v882, %v887
          %v893 = vmul.f32 %v882, %v891
          %v894 = vadd.f32 %v878, %v892
          %v895 = vadd.f32 %v879, %v893
          %896 = vset.pattern.permute.xlu0 23
          %897 = vperm.xlu0 %896, %v371
          %v898 = vpop.permute.xlu0 %897
          %v900 = vlaneseq
          %v901 = vshrl.u32 %v900, 7
          %v902 = vsub.s32 3, %v901
          %v903 = vrot.slane %v846, %v902
          %v904 = vlaneseq
          %v905 = vshrl.u32 %v904, 7
          %v906 = vsub.s32 3, %v905
          %v907 = vrot.slane %v847, %v906
          %v908 = vmul.f32 %v898, %v903
          %v909 = vmul.f32 %v898, %v907
          %v910 = vadd.f32 %v894, %v908
          %v911 = vadd.f32 %v895, %v909
          %912 = vrot.lane.b32.xlu0 %v370, 113
          %v913 = vpop.permute.xlu0 %912
          %914 = vrot.lane.b32.xlu0 %v374, 113
          %v915 = vpop.permute.xlu0 %914
          %vm916 = vcmp.lt.s32.totalorder %v381, 113
          %v917 = vsel %vm916, %v913, %v915
          %v918 = vsel %vm916, %v915, %v913
          %s919 = scalar_lea.vmem [#allocation8], 6
          %v920 = vld [vmem:[%s919] ss:$8 sm:$0x3]
          %v922 = vlaneseq
          %v923 = vshrl.u32 %v922, 7
          %v924 = vsub.s32 0, %v923
          %v925 = vrot.slane %v920, %v924
          %v926 = vlaneseq
          %v927 = vshrl.u32 %v926, 7
          %v928 = vsub.s32 1, %v927
          %v929 = vrot.slane %v920, %v928
          %v932 = vmul.f32 %v917, %v925
          %v933 = vmul.f32 %v918, %v929
          %934 = vset.pattern.permute.xlu0 24
          %935 = vperm.xlu0 %934, %v371
          %v936 = vpop.permute.xlu0 %935
          %v938 = vlaneseq
          %v939 = vshrl.u32 %v938, 7
          %v940 = vsub.s32 0, %v939
          %v941 = vrot.slane %v932, %v940
          %v942 = vlaneseq
          %v943 = vshrl.u32 %v942, 7
          %v944 = vsub.s32 0, %v943
          %v945 = vrot.slane %v933, %v944
          %v946 = vmul.f32 %v936, %v941
          %v947 = vmul.f32 %v936, %v945
          %v948 = vadd.f32 %v910, %v946
          %v949 = vadd.f32 %v911, %v947
          %950 = vset.pattern.permute.xlu0 25
          %951 = vperm.xlu0 %950, %v371
          %v952 = vpop.permute.xlu0 %951
          %v954 = vlaneseq
          %v955 = vshrl.u32 %v954, 7
          %v956 = vsub.s32 1, %v955
          %v957 = vrot.slane %v932, %v956
          %v958 = vlaneseq
          %v959 = vshrl.u32 %v958, 7
          %v960 = vsub.s32 1, %v959
          %v961 = vrot.slane %v933, %v960
          %v962 = vmul.f32 %v952, %v957
          %v963 = vmul.f32 %v952, %v961
          %v964 = vadd.f32 %v948, %v962
          %v965 = vadd.f32 %v949, %v963
          %966 = vset.pattern.permute.xlu0 26
          %967 = vperm.xlu0 %966, %v371
          %v968 = vpop.permute.xlu0 %967
          %v970 = vlaneseq
          %v971 = vshrl.u32 %v970, 7
          %v972 = vsub.s32 2, %v971
          %v973 = vrot.slane %v932, %v972
          %v974 = vlaneseq
          %v975 = vshrl.u32 %v974, 7
          %v976 = vsub.s32 2, %v975
          %v977 = vrot.slane %v933, %v976
          %v978 = vmul.f32 %v968, %v973
          %v979 = vmul.f32 %v968, %v977
          %v980 = vadd.f32 %v964, %v978
          %v981 = vadd.f32 %v965, %v979
          %982 = vset.pattern.permute.xlu0 27
          %983 = vperm.xlu0 %982, %v371
          %v984 = vpop.permute.xlu0 %983
          %v986 = vlaneseq
          %v987 = vshrl.u32 %v986, 7
          %v988 = vsub.s32 3, %v987
          %v989 = vrot.slane %v932, %v988
          %v990 = vlaneseq
          %v991 = vshrl.u32 %v990, 7
          %v992 = vsub.s32 3, %v991
          %v993 = vrot.slane %v933, %v992
          %v994 = vmul.f32 %v984, %v989
          %v995 = vmul.f32 %v984, %v993
          %v996 = vadd.f32 %v980, %v994
          %v997 = vadd.f32 %v981, %v995
          %998 = vrot.lane.b32.xlu0 %v370, 112
          %v999 = vpop.permute.xlu0 %998
          %1000 = vrot.lane.b32.xlu0 %v374, 112
          %v1001 = vpop.permute.xlu0 %1000
          %vm1002 = vcmp.lt.s32.totalorder %v381, 112
          %v1003 = vsel %vm1002, %v999, %v1001
          %v1004 = vsel %vm1002, %v1001, %v999
          %s1005 = scalar_lea.vmem [#allocation8], 7
          %v1006 = vld [vmem:[%s1005] ss:$8 sm:$0x3]
          %v1008 = vlaneseq
          %v1009 = vshrl.u32 %v1008, 7
          %v1010 = vsub.s32 0, %v1009
          %v1011 = vrot.slane %v1006, %v1010
          %v1012 = vlaneseq
          %v1013 = vshrl.u32 %v1012, 7
          %v1014 = vsub.s32 1, %v1013
          %v1015 = vrot.slane %v1006, %v1014
          %v1018 = vmul.f32 %v1003, %v1011
          %v1019 = vmul.f32 %v1004, %v1015
          %1020 = vset.pattern.permute.xlu0 28
          %1021 = vperm.xlu0 %1020, %v371
          %v1022 = vpop.permute.xlu0 %1021
          %v1024 = vlaneseq
          %v1025 = vshrl.u32 %v1024, 7
          %v1026 = vsub.s32 0, %v1025
          %v1027 = vrot.slane %v1018, %v1026
          %v1028 = vlaneseq
          %v1029 = vshrl.u32 %v1028, 7
          %v1030 = vsub.s32 0, %v1029
          %v1031 = vrot.slane %v1019, %v1030
          %v1032 = vmul.f32 %v1022, %v1027
          %v1033 = vmul.f32 %v1022, %v1031
          %v1034 = vadd.f32 %v996, %v1032
          %v1035 = vadd.f32 %v997, %v1033
          %1036 = vset.pattern.permute.xlu0 29
          %1037 = vperm.xlu0 %1036, %v371
          %v1038 = vpop.permute.xlu0 %1037
          %v1040 = vlaneseq
          %v1041 = vshrl.u32 %v1040, 7
          %v1042 = vsub.s32 1, %v1041
          %v1043 = vrot.slane %v1018, %v1042
          %v1044 = vlaneseq
          %v1045 = vshrl.u32 %v1044, 7
          %v1046 = vsub.s32 1, %v1045
          %v1047 = vrot.slane %v1019, %v1046
          %v1048 = vmul.f32 %v1038, %v1043
          %v1049 = vmul.f32 %v1038, %v1047
          %v1050 = vadd.f32 %v1034, %v1048
          %v1051 = vadd.f32 %v1035, %v1049
          %1052 = vset.pattern.permute.xlu0 30
          %1053 = vperm.xlu0 %1052, %v371
          %v1054 = vpop.permute.xlu0 %1053
          %v1056 = vlaneseq
          %v1057 = vshrl.u32 %v1056, 7
          %v1058 = vsub.s32 2, %v1057
          %v1059 = vrot.slane %v1018, %v1058
          %v1060 = vlaneseq
          %v1061 = vshrl.u32 %v1060, 7
          %v1062 = vsub.s32 2, %v1061
          %v1063 = vrot.slane %v1019, %v1062
          %v1064 = vmul.f32 %v1054, %v1059
          %v1065 = vmul.f32 %v1054, %v1063
          %v1066 = vadd.f32 %v1050, %v1064
          %v1067 = vadd.f32 %v1051, %v1065
          %1068 = vset.pattern.permute.xlu0 31
          %1069 = vperm.xlu0 %1068, %v371
          %v1070 = vpop.permute.xlu0 %1069
          %v1072 = vlaneseq
          %v1073 = vshrl.u32 %v1072, 7
          %v1074 = vsub.s32 3, %v1073
          %v1075 = vrot.slane %v1018, %v1074
          %v1076 = vlaneseq
          %v1077 = vshrl.u32 %v1076, 7
          %v1078 = vsub.s32 3, %v1077
          %v1079 = vrot.slane %v1019, %v1078
          %v1080 = vmul.f32 %v1070, %v1075
          %v1081 = vmul.f32 %v1070, %v1079
          %v1082 = vadd.f32 %v1066, %v1080
          %v1083 = vadd.f32 %v1067, %v1081
          %1084 = vrot.lane.b32.xlu0 %v370, 111
          %v1085 = vpop.permute.xlu0 %1084
          %1086 = vrot.lane.b32.xlu0 %v374, 111
          %v1087 = vpop.permute.xlu0 %1086
          %vm1088 = vcmp.lt.s32.totalorder %v381, 111
          %v1089 = vsel %vm1088, %v1085, %v1087
          %v1090 = vsel %vm1088, %v1087, %v1085
          %s1091 = scalar_lea.vmem [#allocation8], 16
          %v1092 = vld [vmem:[%s1091] ss:$8 sm:$0x3]
          %v1094 = vlaneseq
          %v1095 = vshrl.u32 %v1094, 7
          %v1096 = vsub.s32 0, %v1095
          %v1097 = vrot.slane %v1092, %v1096
          %v1098 = vlaneseq
          %v1099 = vshrl.u32 %v1098, 7
          %v1100 = vsub.s32 1, %v1099
          %v1101 = vrot.slane %v1092, %v1100
          %v1104 = vmul.f32 %v1089, %v1097
          %v1105 = vmul.f32 %v1090, %v1101
          %1106 = vset.pattern.permute.xlu0 32
          %1107 = vperm.xlu0 %1106, %v371
          %v1108 = vpop.permute.xlu0 %1107
          %v1110 = vlaneseq
          %v1111 = vshrl.u32 %v1110, 7
          %v1112 = vsub.s32 0, %v1111
          %v1113 = vrot.slane %v1104, %v1112
          %v1114 = vlaneseq
          %v1115 = vshrl.u32 %v1114, 7
          %v1116 = vsub.s32 0, %v1115
          %v1117 = vrot.slane %v1105, %v1116
          %v1118 = vmul.f32 %v1108, %v1113
          %v1119 = vmul.f32 %v1108, %v1117
          %v1120 = vadd.f32 %v1082, %v1118
          %v1121 = vadd.f32 %v1083, %v1119
          %1122 = vset.pattern.permute.xlu0 33
          %1123 = vperm.xlu0 %1122, %v371
          %v1124 = vpop.permute.xlu0 %1123
          %v1126 = vlaneseq
          %v1127 = vshrl.u32 %v1126, 7
          %v1128 = vsub.s32 1, %v1127
          %v1129 = vrot.slane %v1104, %v1128
          %v1130 = vlaneseq
          %v1131 = vshrl.u32 %v1130, 7
          %v1132 = vsub.s32 1, %v1131
          %v1133 = vrot.slane %v1105, %v1132
          %v1134 = vmul.f32 %v1124, %v1129
          %v1135 = vmul.f32 %v1124, %v1133
          %v1136 = vadd.f32 %v1120, %v1134
          %v1137 = vadd.f32 %v1121, %v1135
          %1138 = vset.pattern.permute.xlu0 34
          %1139 = vperm.xlu0 %1138, %v371
          %v1140 = vpop.permute.xlu0 %1139
          %v1142 = vlaneseq
          %v1143 = vshrl.u32 %v1142, 7
          %v1144 = vsub.s32 2, %v1143
          %v1145 = vrot.slane %v1104, %v1144
          %v1146 = vlaneseq
          %v1147 = vshrl.u32 %v1146, 7
          %v1148 = vsub.s32 2, %v1147
          %v1149 = vrot.slane %v1105, %v1148
          %v1150 = vmul.f32 %v1140, %v1145
          %v1151 = vmul.f32 %v1140, %v1149
          %v1152 = vadd.f32 %v1136, %v1150
          %v1153 = vadd.f32 %v1137, %v1151
          %1154 = vset.pattern.permute.xlu0 35
          %1155 = vperm.xlu0 %1154, %v371
          %v1156 = vpop.permute.xlu0 %1155
          %v1158 = vlaneseq
          %v1159 = vshrl.u32 %v1158, 7
          %v1160 = vsub.s32 3, %v1159
          %v1161 = vrot.slane %v1104, %v1160
          %v1162 = vlaneseq
          %v1163 = vshrl.u32 %v1162, 7
          %v1164 = vsub.s32 3, %v1163
          %v1165 = vrot.slane %v1105, %v1164
          %v1166 = vmul.f32 %v1156, %v1161
          %v1167 = vmul.f32 %v1156, %v1165
          %v1168 = vadd.f32 %v1152, %v1166
          %v1169 = vadd.f32 %v1153, %v1167
          %1171 = vset.pattern.permute.xlu0 0
          %1172 = vperm.xlu0 %1171, %v372
          %v1173 = vpop.permute.xlu0 %1172
          %v1175 = vadd.f32 %v1168, %v1173
          %v1176 = vadd.f32 %v1169, %v1173
          %v1179 = vcombine.low %v1175, %v1176
          %1181 = vst [vmem:[#allocation2] sm:$0xff] %v1179
        $region64: #{tpu_custom_call.1} parent=47 // pred_fallthru
          _
        %v1182 = vld [vmem:[%s326] sm:$0xff]
        %v1183 = vld [vmem:[%s5] sm:$0xf]
        %v1184 = vld [vmem:[%s6] sm:$0xf]
        %v1186 = vcombine.high %v1182, %v1182
        %1188 = vrot.lane.b32.xlu0 %v1182, 17
        %v1189 = vpop.permute.xlu0 %1188
        %1190 = vrot.lane.b32.xlu0 %v1186, 17
        %v1191 = vpop.permute.xlu0 %1190
        %v1192 = vlaneseq
        %v1193 = vand.u32 %v1192, 127
        %vm1194 = vcmp.lt.s32.totalorder %v1193, 17
        %v1195 = vsel %vm1194, %v1189, %v1191
        %v1196 = vsel %vm1194, %v1191, %v1189
        %v1197 = vld [vmem:[#allocation8] ss:$8 sm:$0x3]
        %v1199 = vlaneseq
        %v1200 = vshrl.u32 %v1199, 7
        %v1201 = vsub.s32 0, %v1200
        %v1202 = vrot.slane %v1197, %v1201
        %v1203 = vlaneseq
        %v1204 = vshrl.u32 %v1203, 7
        %v1205 = vsub.s32 1, %v1204
        %v1206 = vrot.slane %v1197, %v1205
        %v1209 = vmul.f32 %v1196, %v1202
        %v1210 = vmul.f32 %v1195, %v1206
        %1212 = vset.pattern.permute.xlu0 0
        %1213 = vperm.xlu0 %1212, %v1183
        %v1214 = vpop.permute.xlu0 %1213
        %v1216 = vlaneseq
        %v1217 = vshrl.u32 %v1216, 7
        %v1218 = vsub.s32 0, %v1217
        %v1219 = vrot.slane %v1209, %v1218
        %v1220 = vlaneseq
        %v1221 = vshrl.u32 %v1220, 7
        %v1222 = vsub.s32 0, %v1221
        %v1223 = vrot.slane %v1210, %v1222
        %v1224 = vmul.f32 %v1214, %v1219
        %v1225 = vmul.f32 %v1214, %v1223
        %v1226 = vadd.f32 %v1224, 0.0
        %v1227 = vadd.f32 %v1225, 0.0
        %1228 = vset.pattern.permute.xlu0 1
        %1229 = vperm.xlu0 %1228, %v1183
        %v1230 = vpop.permute.xlu0 %1229
        %v1232 = vlaneseq
        %v1233 = vshrl.u32 %v1232, 7
        %v1234 = vsub.s32 1, %v1233
        %v1235 = vrot.slane %v1209, %v1234
        %v1236 = vlaneseq
        %v1237 = vshrl.u32 %v1236, 7
        %v1238 = vsub.s32 1, %v1237
        %v1239 = vrot.slane %v1210, %v1238
        %v1240 = vmul.f32 %v1230, %v1235
        %v1241 = vmul.f32 %v1230, %v1239
        %v1242 = vadd.f32 %v1226, %v1240
        %v1243 = vadd.f32 %v1227, %v1241
        %1244 = vset.pattern.permute.xlu0 2
        %1245 = vperm.xlu0 %1244, %v1183
        %v1246 = vpop.permute.xlu0 %1245
        %v1248 = vlaneseq
        %v1249 = vshrl.u32 %v1248, 7
        %v1250 = vsub.s32 2, %v1249
        %v1251 = vrot.slane %v1209, %v1250
        %v1252 = vlaneseq
        %v1253 = vshrl.u32 %v1252, 7
        %v1254 = vsub.s32 2, %v1253
        %v1255 = vrot.slane %v1210, %v1254
        %v1256 = vmul.f32 %v1246, %v1251
        %v1257 = vmul.f32 %v1246, %v1255
        %v1258 = vadd.f32 %v1242, %v1256
        %v1259 = vadd.f32 %v1243, %v1257
        %1260 = vset.pattern.permute.xlu0 3
        %1261 = vperm.xlu0 %1260, %v1183
        %v1262 = vpop.permute.xlu0 %1261
        %v1264 = vlaneseq
        %v1265 = vshrl.u32 %v1264, 7
        %v1266 = vsub.s32 3, %v1265
        %v1267 = vrot.slane %v1209, %v1266
        %v1268 = vlaneseq
        %v1269 = vshrl.u32 %v1268, 7
        %v1270 = vsub.s32 3, %v1269
        %v1271 = vrot.slane %v1210, %v1270
        %v1272 = vmul.f32 %v1262, %v1267
        %v1273 = vmul.f32 %v1262, %v1271
        %v1274 = vadd.f32 %v1258, %v1272
        %v1275 = vadd.f32 %v1259, %v1273
        %1276 = vrot.lane.b32.xlu0 %v1182, 16
        %v1277 = vpop.permute.xlu0 %1276
        %1278 = vrot.lane.b32.xlu0 %v1186, 16
        %v1279 = vpop.permute.xlu0 %1278
        %vm1280 = vcmp.lt.s32.totalorder %v1193, 16
        %v1281 = vsel %vm1280, %v1277, %v1279
        %v1282 = vsel %vm1280, %v1279, %v1277
        %s1283 = scalar_lea.vmem [#allocation8], 1
        %v1284 = vld [vmem:[%s1283] ss:$8 sm:$0x3]
        %v1286 = vlaneseq
        %v1287 = vshrl.u32 %v1286, 7
        %v1288 = vsub.s32 0, %v1287
        %v1289 = vrot.slane %v1284, %v1288
        %v1290 = vlaneseq
        %v1291 = vshrl.u32 %v1290, 7
        %v1292 = vsub.s32 1, %v1291
        %v1293 = vrot.slane %v1284, %v1292
        %v1296 = vmul.f32 %v1282, %v1289
        %v1297 = vmul.f32 %v1281, %v1293
        %1298 = vset.pattern.permute.xlu0 4
        %1299 = vperm.xlu0 %1298, %v1183
        %v1300 = vpop.permute.xlu0 %1299
        %v1302 = vlaneseq
        %v1303 = vshrl.u32 %v1302, 7
        %v1304 = vsub.s32 0, %v1303
        %v1305 = vrot.slane %v1296, %v1304
        %v1306 = vlaneseq
        %v1307 = vshrl.u32 %v1306, 7
        %v1308 = vsub.s32 0, %v1307
        %v1309 = vrot.slane %v1297, %v1308
        %v1310 = vmul.f32 %v1300, %v1305
        %v1311 = vmul.f32 %v1300, %v1309
        %v1312 = vadd.f32 %v1274, %v1310
        %v1313 = vadd.f32 %v1275, %v1311
        %1314 = vset.pattern.permute.xlu0 5
        %1315 = vperm.xlu0 %1314, %v1183
        %v1316 = vpop.permute.xlu0 %1315
        %v1318 = vlaneseq
        %v1319 = vshrl.u32 %v1318, 7
        %v1320 = vsub.s32 1, %v1319
        %v1321 = vrot.slane %v1296, %v1320
        %v1322 = vlaneseq
        %v1323 = vshrl.u32 %v1322, 7
        %v1324 = vsub.s32 1, %v1323
        %v1325 = vrot.slane %v1297, %v1324
        %v1326 = vmul.f32 %v1316, %v1321
        %v1327 = vmul.f32 %v1316, %v1325
        %v1328 = vadd.f32 %v1312, %v1326
        %v1329 = vadd.f32 %v1313, %v1327
        %1330 = vset.pattern.permute.xlu0 6
        %1331 = vperm.xlu0 %1330, %v1183
        %v1332 = vpop.permute.xlu0 %1331
        %v1334 = vlaneseq
        %v1335 = vshrl.u32 %v1334, 7
        %v1336 = vsub.s32 2, %v1335
        %v1337 = vrot.slane %v1296, %v1336
        %v1338 = vlaneseq
        %v1339 = vshrl.u32 %v1338, 7
        %v1340 = vsub.s32 2, %v1339
        %v1341 = vrot.slane %v1297, %v1340
        %v1342 = vmul.f32 %v1332, %v1337
        %v1343 = vmul.f32 %v1332, %v1341
        %v1344 = vadd.f32 %v1328, %v1342
        %v1345 = vadd.f32 %v1329, %v1343
        %1346 = vset.pattern.permute.xlu0 7
        %1347 = vperm.xlu0 %1346, %v1183
        %v1348 = vpop.permute.xlu0 %1347
        %v1350 = vlaneseq
        %v1351 = vshrl.u32 %v1350, 7
        %v1352 = vsub.s32 3, %v1351
        %v1353 = vrot.slane %v1296, %v1352
        %v1354 = vlaneseq
        %v1355 = vshrl.u32 %v1354, 7
        %v1356 = vsub.s32 3, %v1355
        %v1357 = vrot.slane %v1297, %v1356
        %v1358 = vmul.f32 %v1348, %v1353
        %v1359 = vmul.f32 %v1348, %v1357
        %v1360 = vadd.f32 %v1344, %v1358
        %v1361 = vadd.f32 %v1345, %v1359
        %1362 = vrot.lane.b32.xlu0 %v1182, 15
        %v1363 = vpop.permute.xlu0 %1362
        %1364 = vrot.lane.b32.xlu0 %v1186, 15
        %v1365 = vpop.permute.xlu0 %1364
        %vm1366 = vcmp.lt.s32.totalorder %v1193, 15
        %v1367 = vsel %vm1366, %v1363, %v1365
        %v1368 = vsel %vm1366, %v1365, %v1363
        %s1369 = scalar_lea.vmem [#allocation8], 2
        %v1370 = vld [vmem:[%s1369] ss:$8 sm:$0x3]
        %v1372 = vlaneseq
        %v1373 = vshrl.u32 %v1372, 7
        %v1374 = vsub.s32 0, %v1373
        %v1375 = vrot.slane %v1370, %v1374
        %v1376 = vlaneseq
        %v1377 = vshrl.u32 %v1376, 7
        %v1378 = vsub.s32 1, %v1377
        %v1379 = vrot.slane %v1370, %v1378
        %v1382 = vmul.f32 %v1368, %v1375
        %v1383 = vmul.f32 %v1367, %v1379
        %1384 = vset.pattern.permute.xlu0 8
        %1385 = vperm.xlu0 %1384, %v1183
        %v1386 = vpop.permute.xlu0 %1385
        %v1388 = vlaneseq
        %v1389 = vshrl.u32 %v1388, 7
        %v1390 = vsub.s32 0, %v1389
        %v1391 = vrot.slane %v1382, %v1390
        %v1392 = vlaneseq
        %v1393 = vshrl.u32 %v1392, 7
        %v1394 = vsub.s32 0, %v1393
        %v1395 = vrot.slane %v1383, %v1394
        %v1396 = vmul.f32 %v1386, %v1391
        %v1397 = vmul.f32 %v1386, %v1395
        %v1398 = vadd.f32 %v1360, %v1396
        %v1399 = vadd.f32 %v1361, %v1397
        %1400 = vset.pattern.permute.xlu0 9
        %1401 = vperm.xlu0 %1400, %v1183
        %v1402 = vpop.permute.xlu0 %1401
        %v1404 = vlaneseq
        %v1405 = vshrl.u32 %v1404, 7
        %v1406 = vsub.s32 1, %v1405
        %v1407 = vrot.slane %v1382, %v1406
        %v1408 = vlaneseq
        %v1409 = vshrl.u32 %v1408, 7
        %v1410 = vsub.s32 1, %v1409
        %v1411 = vrot.slane %v1383, %v1410
        %v1412 = vmul.f32 %v1402, %v1407
        %v1413 = vmul.f32 %v1402, %v1411
        %v1414 = vadd.f32 %v1398, %v1412
        %v1415 = vadd.f32 %v1399, %v1413
        %1416 = vset.pattern.permute.xlu0 10
        %1417 = vperm.xlu0 %1416, %v1183
        %v1418 = vpop.permute.xlu0 %1417
        %v1420 = vlaneseq
        %v1421 = vshrl.u32 %v1420, 7
        %v1422 = vsub.s32 2, %v1421
        %v1423 = vrot.slane %v1382, %v1422
        %v1424 = vlaneseq
        %v1425 = vshrl.u32 %v1424, 7
        %v1426 = vsub.s32 2, %v1425
        %v1427 = vrot.slane %v1383, %v1426
        %v1428 = vmul.f32 %v1418, %v1423
        %v1429 = vmul.f32 %v1418, %v1427
        %v1430 = vadd.f32 %v1414, %v1428
        %v1431 = vadd.f32 %v1415, %v1429
        %1432 = vset.pattern.permute.xlu0 11
        %1433 = vperm.xlu0 %1432, %v1183
        %v1434 = vpop.permute.xlu0 %1433
        %v1436 = vlaneseq
        %v1437 = vshrl.u32 %v1436, 7
        %v1438 = vsub.s32 3, %v1437
        %v1439 = vrot.slane %v1382, %v1438
        %v1440 = vlaneseq
        %v1441 = vshrl.u32 %v1440, 7
        %v1442 = vsub.s32 3, %v1441
        %v1443 = vrot.slane %v1383, %v1442
        %v1444 = vmul.f32 %v1434, %v1439
        %v1445 = vmul.f32 %v1434, %v1443
        %v1446 = vadd.f32 %v1430, %v1444
        %v1447 = vadd.f32 %v1431, %v1445
        %1448 = vrot.lane.b32.xlu0 %v1182, 1
        %v1449 = vpop.permute.xlu0 %1448
        %1450 = vrot.lane.b32.xlu0 %v1186, 1
        %v1451 = vpop.permute.xlu0 %1450
        %vm1452 = vcmp.lt.s32.totalorder %v1193, 1
        %v1453 = vsel %vm1452, %v1449, %v1451
        %v1454 = vsel %vm1452, %v1451, %v1449
        %s1455 = scalar_lea.vmem [#allocation8], 3
        %v1456 = vld [vmem:[%s1455] ss:$8 sm:$0x3]
        %v1458 = vlaneseq
        %v1459 = vshrl.u32 %v1458, 7
        %v1460 = vsub.s32 0, %v1459
        %v1461 = vrot.slane %v1456, %v1460
        %v1462 = vlaneseq
        %v1463 = vshrl.u32 %v1462, 7
        %v1464 = vsub.s32 1, %v1463
        %v1465 = vrot.slane %v1456, %v1464
        %v1468 = vmul.f32 %v1454, %v1461
        %v1469 = vmul.f32 %v1453, %v1465
        %1470 = vset.pattern.permute.xlu0 12
        %1471 = vperm.xlu0 %1470, %v1183
        %v1472 = vpop.permute.xlu0 %1471
        %v1474 = vlaneseq
        %v1475 = vshrl.u32 %v1474, 7
        %v1476 = vsub.s32 0, %v1475
        %v1477 = vrot.slane %v1468, %v1476
        %v1478 = vlaneseq
        %v1479 = vshrl.u32 %v1478, 7
        %v1480 = vsub.s32 0, %v1479
        %v1481 = vrot.slane %v1469, %v1480
        %v1482 = vmul.f32 %v1472, %v1477
        %v1483 = vmul.f32 %v1472, %v1481
        %v1484 = vadd.f32 %v1446, %v1482
        %v1485 = vadd.f32 %v1447, %v1483
        %1486 = vset.pattern.permute.xlu0 13
        %1487 = vperm.xlu0 %1486, %v1183
        %v1488 = vpop.permute.xlu0 %1487
        %v1490 = vlaneseq
        %v1491 = vshrl.u32 %v1490, 7
        %v1492 = vsub.s32 1, %v1491
        %v1493 = vrot.slane %v1468, %v1492
        %v1494 = vlaneseq
        %v1495 = vshrl.u32 %v1494, 7
        %v1496 = vsub.s32 1, %v1495
        %v1497 = vrot.slane %v1469, %v1496
        %v1498 = vmul.f32 %v1488, %v1493
        %v1499 = vmul.f32 %v1488, %v1497
        %v1500 = vadd.f32 %v1484, %v1498
        %v1501 = vadd.f32 %v1485, %v1499
        %1502 = vset.pattern.permute.xlu0 14
        %1503 = vperm.xlu0 %1502, %v1183
        %v1504 = vpop.permute.xlu0 %1503
        %v1506 = vlaneseq
        %v1507 = vshrl.u32 %v1506, 7
        %v1508 = vsub.s32 2, %v1507
        %v1509 = vrot.slane %v1468, %v1508
        %v1510 = vlaneseq
        %v1511 = vshrl.u32 %v1510, 7
        %v1512 = vsub.s32 2, %v1511
        %v1513 = vrot.slane %v1469, %v1512
        %v1514 = vmul.f32 %v1504, %v1509
        %v1515 = vmul.f32 %v1504, %v1513
        %v1516 = vadd.f32 %v1500, %v1514
        %v1517 = vadd.f32 %v1501, %v1515
        %1518 = vset.pattern.permute.xlu0 15
        %1519 = vperm.xlu0 %1518, %v1183
        %v1520 = vpop.permute.xlu0 %1519
        %v1522 = vlaneseq
        %v1523 = vshrl.u32 %v1522, 7
        %v1524 = vsub.s32 3, %v1523
        %v1525 = vrot.slane %v1468, %v1524
        %v1526 = vlaneseq
        %v1527 = vshrl.u32 %v1526, 7
        %v1528 = vsub.s32 3, %v1527
        %v1529 = vrot.slane %v1469, %v1528
        %v1530 = vmul.f32 %v1520, %v1525
        %v1531 = vmul.f32 %v1520, %v1529
        %v1532 = vadd.f32 %v1516, %v1530
        %v1533 = vadd.f32 %v1517, %v1531
        %1534 = vset.pattern.permute.xlu0 16
        %1535 = vperm.xlu0 %1534, %v1183
        %v1536 = vpop.permute.xlu0 %1535
        %v1538 = vlaneseq
        %v1539 = vshrl.u32 %v1538, 7
        %v1540 = vsub.s32 0, %v1539
        %v1541 = vrot.slane %v1182, %v1540
        %v1542 = vlaneseq
        %v1543 = vshrl.u32 %v1542, 7
        %v1544 = vsub.s32 4, %v1543
        %v1545 = vrot.slane %v1182, %v1544
        %v1548 = vlaneseq
        %v1549 = vshrl.u32 %v1548, 7
        %v1550 = vsub.s32 0, %v1549
        %v1551 = vrot.slane %v1541, %v1550
        %v1552 = vlaneseq
        %v1553 = vshrl.u32 %v1552, 7
        %v1554 = vsub.s32 0, %v1553
        %v1555 = vrot.slane %v1545, %v1554
        %v1556 = vmul.f32 %v1536, %v1551
        %v1557 = vmul.f32 %v1536, %v1555
        %v1558 = vadd.f32 %v1532, %v1556
        %v1559 = vadd.f32 %v1533, %v1557
        %1560 = vset.pattern.permute.xlu0 17
        %1561 = vperm.xlu0 %1560, %v1183
        %v1562 = vpop.permute.xlu0 %1561
        %v1564 = vlaneseq
        %v1565 = vshrl.u32 %v1564, 7
        %v1566 = vsub.s32 1, %v1565
        %v1567 = vrot.slane %v1182, %v1566
        %v1568 = vlaneseq
        %v1569 = vshrl.u32 %v1568, 7
        %v1570 = vsub.s32 5, %v1569
        %v1571 = vrot.slane %v1182, %v1570
        %v1574 = vlaneseq
        %v1575 = vshrl.u32 %v1574, 7
        %v1576 = vsub.s32 1, %v1575
        %v1577 = vrot.slane %v1567, %v1576
        %v1578 = vlaneseq
        %v1579 = vshrl.u32 %v1578, 7
        %v1580 = vsub.s32 1, %v1579
        %v1581 = vrot.slane %v1571, %v1580
        %v1582 = vmul.f32 %v1562, %v1577
        %v1583 = vmul.f32 %v1562, %v1581
        %v1584 = vadd.f32 %v1558, %v1582
        %v1585 = vadd.f32 %v1559, %v1583
        %1586 = vset.pattern.permute.xlu0 18
        %1587 = vperm.xlu0 %1586, %v1183
        %v1588 = vpop.permute.xlu0 %1587
        %v1590 = vlaneseq
        %v1591 = vshrl.u32 %v1590, 7
        %v1592 = vsub.s32 2, %v1591
        %v1593 = vrot.slane %v1182, %v1592
        %v1594 = vlaneseq
        %v1595 = vshrl.u32 %v1594, 7
        %v1596 = vsub.s32 6, %v1595
        %v1597 = vrot.slane %v1182, %v1596
        %v1600 = vlaneseq
        %v1601 = vshrl.u32 %v1600, 7
        %v1602 = vsub.s32 2, %v1601
        %v1603 = vrot.slane %v1593, %v1602
        %v1604 = vlaneseq
        %v1605 = vshrl.u32 %v1604, 7
        %v1606 = vsub.s32 2, %v1605
        %v1607 = vrot.slane %v1597, %v1606
        %v1608 = vmul.f32 %v1588, %v1603
        %v1609 = vmul.f32 %v1588, %v1607
        %v1610 = vadd.f32 %v1584, %v1608
        %v1611 = vadd.f32 %v1585, %v1609
        %1612 = vset.pattern.permute.xlu0 19
        %1613 = vperm.xlu0 %1612, %v1183
        %v1614 = vpop.permute.xlu0 %1613
        %v1616 = vlaneseq
        %v1617 = vshrl.u32 %v1616, 7
        %v1618 = vsub.s32 3, %v1617
        %v1619 = vrot.slane %v1182, %v1618
        %v1620 = vlaneseq
        %v1621 = vshrl.u32 %v1620, 7
        %v1622 = vsub.s32 7, %v1621
        %v1623 = vrot.slane %v1182, %v1622
        %v1626 = vlaneseq
        %v1627 = vshrl.u32 %v1626, 7
        %v1628 = vsub.s32 3, %v1627
        %v1629 = vrot.slane %v1619, %v1628
        %v1630 = vlaneseq
        %v1631 = vshrl.u32 %v1630, 7
        %v1632 = vsub.s32 3, %v1631
        %v1633 = vrot.slane %v1623, %v1632
        %v1634 = vmul.f32 %v1614, %v1629
        %v1635 = vmul.f32 %v1614, %v1633
        %v1636 = vadd.f32 %v1610, %v1634
        %v1637 = vadd.f32 %v1611, %v1635
        %1638 = vrot.lane.b32.xlu0 %v1182, 127
        %v1639 = vpop.permute.xlu0 %1638
        %1640 = vrot.lane.b32.xlu0 %v1186, 127
        %v1641 = vpop.permute.xlu0 %1640
        %vm1642 = vcmp.lt.s32.totalorder %v1193, 127
        %v1643 = vsel %vm1642, %v1639, %v1641
        %v1644 = vsel %vm1642, %v1641, %v1639
        %s1645 = scalar_lea.vmem [#allocation8], 5
        %v1646 = vld [vmem:[%s1645] ss:$8 sm:$0x3]
        %v1648 = vlaneseq
        %v1649 = vshrl.u32 %v1648, 7
        %v1650 = vsub.s32 0, %v1649
        %v1651 = vrot.slane %v1646, %v1650
        %v1652 = vlaneseq
        %v1653 = vshrl.u32 %v1652, 7
        %v1654 = vsub.s32 1, %v1653
        %v1655 = vrot.slane %v1646, %v1654
        %v1658 = vmul.f32 %v1643, %v1651
        %v1659 = vmul.f32 %v1644, %v1655
        %1660 = vset.pattern.permute.xlu0 20
        %1661 = vperm.xlu0 %1660, %v1183
        %v1662 = vpop.permute.xlu0 %1661
        %v1664 = vlaneseq
        %v1665 = vshrl.u32 %v1664, 7
        %v1666 = vsub.s32 0, %v1665
        %v1667 = vrot.slane %v1658, %v1666
        %v1668 = vlaneseq
        %v1669 = vshrl.u32 %v1668, 7
        %v1670 = vsub.s32 0, %v1669
        %v1671 = vrot.slane %v1659, %v1670
        %v1672 = vmul.f32 %v1662, %v1667
        %v1673 = vmul.f32 %v1662, %v1671
        %v1674 = vadd.f32 %v1636, %v1672
        %v1675 = vadd.f32 %v1637, %v1673
        %1676 = vset.pattern.permute.xlu0 21
        %1677 = vperm.xlu0 %1676, %v1183
        %v1678 = vpop.permute.xlu0 %1677
        %v1680 = vlaneseq
        %v1681 = vshrl.u32 %v1680, 7
        %v1682 = vsub.s32 1, %v1681
        %v1683 = vrot.slane %v1658, %v1682
        %v1684 = vlaneseq
        %v1685 = vshrl.u32 %v1684, 7
        %v1686 = vsub.s32 1, %v1685
        %v1687 = vrot.slane %v1659, %v1686
        %v1688 = vmul.f32 %v1678, %v1683
        %v1689 = vmul.f32 %v1678, %v1687
        %v1690 = vadd.f32 %v1674, %v1688
        %v1691 = vadd.f32 %v1675, %v1689
        %1692 = vset.pattern.permute.xlu0 22
        %1693 = vperm.xlu0 %1692, %v1183
        %v1694 = vpop.permute.xlu0 %1693
        %v1696 = vlaneseq
        %v1697 = vshrl.u32 %v1696, 7
        %v1698 = vsub.s32 2, %v1697
        %v1699 = vrot.slane %v1658, %v1698
        %v1700 = vlaneseq
        %v1701 = vshrl.u32 %v1700, 7
        %v1702 = vsub.s32 2, %v1701
        %v1703 = vrot.slane %v1659, %v1702
        %v1704 = vmul.f32 %v1694, %v1699
        %v1705 = vmul.f32 %v1694, %v1703
        %v1706 = vadd.f32 %v1690, %v1704
        %v1707 = vadd.f32 %v1691, %v1705
        %1708 = vset.pattern.permute.xlu0 23
        %1709 = vperm.xlu0 %1708, %v1183
        %v1710 = vpop.permute.xlu0 %1709
        %v1712 = vlaneseq
        %v1713 = vshrl.u32 %v1712, 7
        %v1714 = vsub.s32 3, %v1713
        %v1715 = vrot.slane %v1658, %v1714
        %v1716 = vlaneseq
        %v1717 = vshrl.u32 %v1716, 7
        %v1718 = vsub.s32 3, %v1717
        %v1719 = vrot.slane %v1659, %v1718
        %v1720 = vmul.f32 %v1710, %v1715
        %v1721 = vmul.f32 %v1710, %v1719
        %v1722 = vadd.f32 %v1706, %v1720
        %v1723 = vadd.f32 %v1707, %v1721
        %1724 = vrot.lane.b32.xlu0 %v1182, 113
        %v1725 = vpop.permute.xlu0 %1724
        %1726 = vrot.lane.b32.xlu0 %v1186, 113
        %v1727 = vpop.permute.xlu0 %1726
        %vm1728 = vcmp.lt.s32.totalorder %v1193, 113
        %v1729 = vsel %vm1728, %v1725, %v1727
        %v1730 = vsel %vm1728, %v1727, %v1725
        %s1731 = scalar_lea.vmem [#allocation8], 6
        %v1732 = vld [vmem:[%s1731] ss:$8 sm:$0x3]
        %v1734 = vlaneseq
        %v1735 = vshrl.u32 %v1734, 7
        %v1736 = vsub.s32 0, %v1735
        %v1737 = vrot.slane %v1732, %v1736
        %v1738 = vlaneseq
        %v1739 = vshrl.u32 %v1738, 7
        %v1740 = vsub.s32 1, %v1739
        %v1741 = vrot.slane %v1732, %v1740
        %v1744 = vmul.f32 %v1729, %v1737
        %v1745 = vmul.f32 %v1730, %v1741
        %1746 = vset.pattern.permute.xlu0 24
        %1747 = vperm.xlu0 %1746, %v1183
        %v1748 = vpop.permute.xlu0 %1747
        %v1750 = vlaneseq
        %v1751 = vshrl.u32 %v1750, 7
        %v1752 = vsub.s32 0, %v1751
        %v1753 = vrot.slane %v1744, %v1752
        %v1754 = vlaneseq
        %v1755 = vshrl.u32 %v1754, 7
        %v1756 = vsub.s32 0, %v1755
        %v1757 = vrot.slane %v1745, %v1756
        %v1758 = vmul.f32 %v1748, %v1753
        %v1759 = vmul.f32 %v1748, %v1757
        %v1760 = vadd.f32 %v1722, %v1758
        %v1761 = vadd.f32 %v1723, %v1759
        %1762 = vset.pattern.permute.xlu0 25
        %1763 = vperm.xlu0 %1762, %v1183
        %v1764 = vpop.permute.xlu0 %1763
        %v1766 = vlaneseq
        %v1767 = vshrl.u32 %v1766, 7
        %v1768 = vsub.s32 1, %v1767
        %v1769 = vrot.slane %v1744, %v1768
        %v1770 = vlaneseq
        %v1771 = vshrl.u32 %v1770, 7
        %v1772 = vsub.s32 1, %v1771
        %v1773 = vrot.slane %v1745, %v1772
        %v1774 = vmul.f32 %v1764, %v1769
        %v1775 = vmul.f32 %v1764, %v1773
        %v1776 = vadd.f32 %v1760, %v1774
        %v1777 = vadd.f32 %v1761, %v1775
        %1778 = vset.pattern.permute.xlu0 26
        %1779 = vperm.xlu0 %1778, %v1183
        %v1780 = vpop.permute.xlu0 %1779
        %v1782 = vlaneseq
        %v1783 = vshrl.u32 %v1782, 7
        %v1784 = vsub.s32 2, %v1783
        %v1785 = vrot.slane %v1744, %v1784
        %v1786 = vlaneseq
        %v1787 = vshrl.u32 %v1786, 7
        %v1788 = vsub.s32 2, %v1787
        %v1789 = vrot.slane %v1745, %v1788
        %v1790 = vmul.f32 %v1780, %v1785
        %v1791 = vmul.f32 %v1780, %v1789
        %v1792 = vadd.f32 %v1776, %v1790
        %v1793 = vadd.f32 %v1777, %v1791
        %1794 = vset.pattern.permute.xlu0 27
        %1795 = vperm.xlu0 %1794, %v1183
        %v1796 = vpop.permute.xlu0 %1795
        %v1798 = vlaneseq
        %v1799 = vshrl.u32 %v1798, 7
        %v1800 = vsub.s32 3, %v1799
        %v1801 = vrot.slane %v1744, %v1800
        %v1802 = vlaneseq
        %v1803 = vshrl.u32 %v1802, 7
        %v1804 = vsub.s32 3, %v1803
        %v1805 = vrot.slane %v1745, %v1804
        %v1806 = vmul.f32 %v1796, %v1801
        %v1807 = vmul.f32 %v1796, %v1805
        %v1808 = vadd.f32 %v1792, %v1806
        %v1809 = vadd.f32 %v1793, %v1807
        %1810 = vrot.lane.b32.xlu0 %v1182, 112
        %v1811 = vpop.permute.xlu0 %1810
        %1812 = vrot.lane.b32.xlu0 %v1186, 112
        %v1813 = vpop.permute.xlu0 %1812
        %vm1814 = vcmp.lt.s32.totalorder %v1193, 112
        %v1815 = vsel %vm1814, %v1811, %v1813
        %v1816 = vsel %vm1814, %v1813, %v1811
        %s1817 = scalar_lea.vmem [#allocation8], 7
        %v1818 = vld [vmem:[%s1817] ss:$8 sm:$0x3]
        %v1820 = vlaneseq
        %v1821 = vshrl.u32 %v1820, 7
        %v1822 = vsub.s32 0, %v1821
        %v1823 = vrot.slane %v1818, %v1822
        %v1824 = vlaneseq
        %v1825 = vshrl.u32 %v1824, 7
        %v1826 = vsub.s32 1, %v1825
        %v1827 = vrot.slane %v1818, %v1826
        %v1830 = vmul.f32 %v1815, %v1823
        %v1831 = vmul.f32 %v1816, %v1827
        %1832 = vset.pattern.permute.xlu0 28
        %1833 = vperm.xlu0 %1832, %v1183
        %v1834 = vpop.permute.xlu0 %1833
        %v1836 = vlaneseq
        %v1837 = vshrl.u32 %v1836, 7
        %v1838 = vsub.s32 0, %v1837
        %v1839 = vrot.slane %v1830, %v1838
        %v1840 = vlaneseq
        %v1841 = vshrl.u32 %v1840, 7
        %v1842 = vsub.s32 0, %v1841
        %v1843 = vrot.slane %v1831, %v1842
        %v1844 = vmul.f32 %v1834, %v1839
        %v1845 = vmul.f32 %v1834, %v1843
        %v1846 = vadd.f32 %v1808, %v1844
        %v1847 = vadd.f32 %v1809, %v1845
        %1848 = vset.pattern.permute.xlu0 29
        %1849 = vperm.xlu0 %1848, %v1183
        %v1850 = vpop.permute.xlu0 %1849
        %v1852 = vlaneseq
        %v1853 = vshrl.u32 %v1852, 7
        %v1854 = vsub.s32 1, %v1853
        %v1855 = vrot.slane %v1830, %v1854
        %v1856 = vlaneseq
        %v1857 = vshrl.u32 %v1856, 7
        %v1858 = vsub.s32 1, %v1857
        %v1859 = vrot.slane %v1831, %v1858
        %v1860 = vmul.f32 %v1850, %v1855
        %v1861 = vmul.f32 %v1850, %v1859
        %v1862 = vadd.f32 %v1846, %v1860
        %v1863 = vadd.f32 %v1847, %v1861
        %1864 = vset.pattern.permute.xlu0 30
        %1865 = vperm.xlu0 %1864, %v1183
        %v1866 = vpop.permute.xlu0 %1865
        %v1868 = vlaneseq
        %v1869 = vshrl.u32 %v1868, 7
        %v1870 = vsub.s32 2, %v1869
        %v1871 = vrot.slane %v1830, %v1870
        %v1872 = vlaneseq
        %v1873 = vshrl.u32 %v1872, 7
        %v1874 = vsub.s32 2, %v1873
        %v1875 = vrot.slane %v1831, %v1874
        %v1876 = vmul.f32 %v1866, %v1871
        %v1877 = vmul.f32 %v1866, %v1875
        %v1878 = vadd.f32 %v1862, %v1876
        %v1879 = vadd.f32 %v1863, %v1877
        %1880 = vset.pattern.permute.xlu0 31
        %1881 = vperm.xlu0 %1880, %v1183
        %v1882 = vpop.permute.xlu0 %1881
        %v1884 = vlaneseq
        %v1885 = vshrl.u32 %v1884, 7
        %v1886 = vsub.s32 3, %v1885
        %v1887 = vrot.slane %v1830, %v1886
        %v1888 = vlaneseq
        %v1889 = vshrl.u32 %v1888, 7
        %v1890 = vsub.s32 3, %v1889
        %v1891 = vrot.slane %v1831, %v1890
        %v1892 = vmul.f32 %v1882, %v1887
        %v1893 = vmul.f32 %v1882, %v1891
        %v1894 = vadd.f32 %v1878, %v1892
        %v1895 = vadd.f32 %v1879, %v1893
        %1896 = vrot.lane.b32.xlu0 %v1182, 111
        %v1897 = vpop.permute.xlu0 %1896
        %1898 = vrot.lane.b32.xlu0 %v1186, 111
        %v1899 = vpop.permute.xlu0 %1898
        %vm1900 = vcmp.lt.s32.totalorder %v1193, 111
        %v1901 = vsel %vm1900, %v1897, %v1899
        %v1902 = vsel %vm1900, %v1899, %v1897
        %s1903 = scalar_lea.vmem [#allocation8], 16
        %v1904 = vld [vmem:[%s1903] ss:$8 sm:$0x3]
        %v1906 = vlaneseq
        %v1907 = vshrl.u32 %v1906, 7
        %v1908 = vsub.s32 0, %v1907
        %v1909 = vrot.slane %v1904, %v1908
        %v1910 = vlaneseq
        %v1911 = vshrl.u32 %v1910, 7
        %v1912 = vsub.s32 1, %v1911
        %v1913 = vrot.slane %v1904, %v1912
        %v1916 = vmul.f32 %v1901, %v1909
        %v1917 = vmul.f32 %v1902, %v1913
        %1918 = vset.pattern.permute.xlu0 32
        %1919 = vperm.xlu0 %1918, %v1183
        %v1920 = vpop.permute.xlu0 %1919
        %v1922 = vlaneseq
        %v1923 = vshrl.u32 %v1922, 7
        %v1924 = vsub.s32 0, %v1923
        %v1925 = vrot.slane %v1916, %v1924
        %v1926 = vlaneseq
        %v1927 = vshrl.u32 %v1926, 7
        %v1928 = vsub.s32 0, %v1927
        %v1929 = vrot.slane %v1917, %v1928
        %v1930 = vmul.f32 %v1920, %v1925
        %v1931 = vmul.f32 %v1920, %v1929
        %v1932 = vadd.f32 %v1894, %v1930
        %v1933 = vadd.f32 %v1895, %v1931
        %1934 = vset.pattern.permute.xlu0 33
        %1935 = vperm.xlu0 %1934, %v1183
        %v1936 = vpop.permute.xlu0 %1935
        %v1938 = vlaneseq
        %v1939 = vshrl.u32 %v1938, 7
        %v1940 = vsub.s32 1, %v1939
        %v1941 = vrot.slane %v1916, %v1940
        %v1942 = vlaneseq
        %v1943 = vshrl.u32 %v1942, 7
        %v1944 = vsub.s32 1, %v1943
        %v1945 = vrot.slane %v1917, %v1944
        %v1946 = vmul.f32 %v1936, %v1941
        %v1947 = vmul.f32 %v1936, %v1945
        %v1948 = vadd.f32 %v1932, %v1946
        %v1949 = vadd.f32 %v1933, %v1947
        %1950 = vset.pattern.permute.xlu0 34
        %1951 = vperm.xlu0 %1950, %v1183
        %v1952 = vpop.permute.xlu0 %1951
        %v1954 = vlaneseq
        %v1955 = vshrl.u32 %v1954, 7
        %v1956 = vsub.s32 2, %v1955
        %v1957 = vrot.slane %v1916, %v1956
        %v1958 = vlaneseq
        %v1959 = vshrl.u32 %v1958, 7
        %v1960 = vsub.s32 2, %v1959
        %v1961 = vrot.slane %v1917, %v1960
        %v1962 = vmul.f32 %v1952, %v1957
        %v1963 = vmul.f32 %v1952, %v1961
        %v1964 = vadd.f32 %v1948, %v1962
        %v1965 = vadd.f32 %v1949, %v1963
        %1966 = vset.pattern.permute.xlu0 35
        %1967 = vperm.xlu0 %1966, %v1183
        %v1968 = vpop.permute.xlu0 %1967
        %v1970 = vlaneseq
        %v1971 = vshrl.u32 %v1970, 7
        %v1972 = vsub.s32 3, %v1971
        %v1973 = vrot.slane %v1916, %v1972
        %v1974 = vlaneseq
        %v1975 = vshrl.u32 %v1974, 7
        %v1976 = vsub.s32 3, %v1975
        %v1977 = vrot.slane %v1917, %v1976
        %v1978 = vmul.f32 %v1968, %v1973
        %v1979 = vmul.f32 %v1968, %v1977
        %v1980 = vadd.f32 %v1964, %v1978
        %v1981 = vadd.f32 %v1965, %v1979
        %1983 = vset.pattern.permute.xlu0 0
        %1984 = vperm.xlu0 %1983, %v1184
        %v1985 = vpop.permute.xlu0 %1984
        %v1987 = vadd.f32 %v1980, %v1985
        %v1988 = vadd.f32 %v1981, %v1985
        %v1989 = vld [vmem:[#allocation2] sm:$0xff]
        %v1991 = vcombine.high %v1989, %v1989
        %v1993 = vmul.f32 %v1987, %v1989
        %v1994 = vmul.f32 %v1988, %v1991
        %vm1995 = vcmask 1043456
        %v1996 = vsel %vm1995, %v1993, 0.0
        %v1997 = vrot.slane %v1996, 4
        %v1998 = vadd.f32 %v1996, %v1997
        %v1999 = vrot.slane %v1998, 2
        %v2000 = vadd.f32 %v1998, %v1999
        %v2001 = vrot.slane %v2000, 1
        %v2002 = vadd.f32 %v2000, %v2001
        %v2003 = vsel %vm1995, %v1994, 0.0
        %v2004 = vrot.slane %v2003, 4
        %v2005 = vadd.f32 %v2003, %v2004
        %v2006 = vrot.slane %v2005, 2
        %v2007 = vadd.f32 %v2005, %v2006
        %v2008 = vrot.slane %v2007, 1
        %v2009 = vadd.f32 %v2007, %v2008
        %v2010 = vxor.u32 %v2002, 2147483648
        %v2011 = vxor.u32 %v2009, 2147483648
        %v2012 = vmul.f32 %v2010, 1.442695
        %v2013 = vpow.pop %v2012
        %v2014 = vmul.f32 %v2011, 1.442695
        %v2015 = vpow.pop %v2014
        %v2016 = vadd.f32 %v2013, 1.0
        %v2017 = vadd.f32 %v2015, 1.0
        %v2018 = vrcp.pop %v2016
        %v2019 = vmul.f32 1.0, %v2018
        %v2020 = vrcp.pop %v2017
        %v2021 = vmul.f32 1.0, %v2020
        %v2024 = vcombine.low %v2019, %v2021
        %v2026 = vmul.f32 %v1182, %v2024
        %2027 = vst [vmem:[%s365] sm:$0xff] %v2026
        %s2028 = sand.u32 %s208, 1
        %s2029 = scalar_lea.sflag [#allocation5], %s2028
        %s2030 = sand.u32 %s208, 1
        %s2031 = smul.addr %s2030, 8
        %s2032 = scalar_lea.vmem [#allocation9], %s2031
        // Predicated region
        $region65: #{tpu_custom_call.1} parent=47 // pred_check
          %p2033 = pneg %p218
        $region66: #{tpu_custom_call.1} parent=47 // pred_check_branch
          %2035 = sbr.rel (%p2033) target = $region68
        $region67: #{tpu_custom_call.1} parent=47 // pred_region
          %s2037 = ssub.s32 128, 128
          %2038 = vsyncadd %s2029, %s2037
          %s2039 = smul.addr %s32, 2
          %s2040 = smul.addr %s31, 6
          %s2041 = sadd.s32 %s2039, %s2040
          %s2042 = smul.addr %s2041, 64
          %s2043 = scalar_lea.hbm %s7, %s2042
          %s2045 = sshll.u32 %s2032, 4
          %s2046 = int_to_ptr.vmem [resolvable:$true] %s2045
          %2048 = dma.vmem_to_hbm [thread:$0]  %s2046, 128, %s2043, %s2029
        $region68: #{tpu_custom_call.1} parent=47 // pred_fallthru
          _
      $region48: #{tpu_custom_call.1} parent=5 // pred_fallthru
        _
      %p2049 = scmp.le.s32.totalorder 2, %s22
      // Predicated region
      $region69: #{tpu_custom_call.1} parent=5 // pred_check
        %p2050 = pneg %p2049
      $region70: #{tpu_custom_call.1} parent=5 // pred_check_branch
        %2052 = sbr.rel (%p2050) target = $region72
      $region71: #{tpu_custom_call.1} parent=5 // pred_region
        %s2053 = ssub.s32 %s22, 2
        // Predicated region
        $region73: #{tpu_custom_call.1} parent=71 // pred_check
          %p2054 = pneg %p224
        $region74: #{tpu_custom_call.1} parent=71 // pred_check_branch
          %2056 = sbr.rel (%p2054) target = $region76
        $region75: #{tpu_custom_call.1} parent=71 // pred_region
          %s2057 = sand.u32 %s209, 1
          %s2058 = scalar_lea.sflag [#allocation5], %s2057
          %s2059 = sand.u32 %s209, 1
          %s2060 = smul.addr %s2059, 8
          %s2061 = scalar_lea.vmem [#allocation9], %s2060
          %2062 = dma.done %s2058, 128
        $region76: #{tpu_custom_call.1} parent=71 // pred_fallthru
          _
      $region72: #{tpu_custom_call.1} parent=5 // pred_fallthru
        _
    $region6: #{tpu_custom_call.1} parent=1 // loop_footer
      %s26 = sadd.s32 1, %s22
    $region7: #{tpu_custom_call.1} parent=1 // loop_footer_branch
      %21 = sbr.rel target = $region3
    $region8: #{tpu_custom_call.1} parent=1 // loop_exit
      _
    %2063 = vsyncpa [#allocation4], 1
    %s2064 = scalar_lea.sflag [#allocation4], 1
    %2065 = vsyncpa %s2064, 1
    %2066 = vsyncpa [#allocation7], 1
    %s2067 = scalar_lea.sflag [#allocation7], 1
    %2068 = vsyncpa %s2067, 1
    %2069 = vsyncpa [#allocation5], 1
    %s2070 = scalar_lea.sflag [#allocation5], 1
    %2071 = vsyncpa %s2070, 1

</llo_original>
